<compile_context>
chip_gen: v6e
topology: v6e:2x2x1
jax: 0.10.0
libtpu: 0.0.40
codegen_flags: <defaults>
</compile_context>

<pallas_src>
import functools

import jax
import jax.numpy as jnp
from jax import lax
from jax.experimental import pallas as pl
from jax.experimental.pallas import tpu as pltpu

KERNEL_SIZE = 11
PADDING = 5


def _conv1d_im2col_kernel(x_ref, w_ref, b_ref, o_ref, xcol_ref, *,
                          seq_len, precision):
    """Conv1d as a single MXU contraction with batch folded onto lanes.

    x_ref   : (C_in, B*L)      input, batch folded onto the lane axis
    w_ref   : (C_out, K*C_in)  im2col-folded weights (matmul LHS)
    b_ref   : (C_out, 1)       bias column (broadcasts along lanes)
    o_ref   : (C_out, B*L)     lane-dense output
    xcol_ref: (K*C_in, B*L)    VMEM im2col scratch
    """
    c_in, bl = x_ref.shape
    c_out = o_ref.shape[0]
    L = seq_len

    x = x_ref[...]

    # Per-lane position within its sequence: lane = b*L + j  ->  j = lane % L.
    lane = lax.broadcasted_iota(jnp.int32, (c_in, bl), 1)
    j = lane % L

    # Build the im2col matrix: row-block k holds x shifted by s = k - PADDING
    # along the sequence axis; halo / cross-batch positions are zeroed by the
    # lane mask.  Rolls use the XLU slot, selects the VPU, and every store is
    # a full (C_in, B*L) block — no memset, no partial-lane masked slice
    # stores (the previous in-kernel bottleneck).
    for k in range(KERNEL_SIZE):
        s = k - PADDING                      # shift in [-5, 5]
        if s == 0:
            block = x
        else:
            rolled = pltpu.roll(x, shift=(-s) % bl, axis=1)
            valid = jnp.logical_and(j >= -s, j < L - s)
            block = jnp.where(valid, rolled, 0.0)
        xcol_ref[k * c_in:(k + 1) * c_in, :] = block.astype(xcol_ref.dtype)

    # ONE deep contraction for the whole problem:
    #   (C_out, K*C_in) @ (K*C_in, B*L), f32 accumulation.
    acc = jnp.dot(w_ref[...], xcol_ref[...],
                  preferred_element_type=jnp.float32,
                  precision=precision)
    acc = acc + jnp.broadcast_to(b_ref[...], (c_out, bl)).astype(jnp.float32)
    o_ref[...] = acc.astype(o_ref.dtype)


def projection_forward(x_ncl, weight, bias, *, compute_dtype=jnp.float32):
    """Conv1d forward matching PyTorch semantics (NCL in, NCL out).

    x_ncl:  (B, C_in, L)     input in PyTorch NCL layout
    weight: (C_out, C_in, K) PyTorch Conv1d weight layout
    bias:   (C_out,)
    returns (B, C_out, L)
    """
    B, c_in, L = x_ncl.shape
    c_out, c_in_w, K = weight.shape
    assert K == KERNEL_SIZE and c_in_w == c_in

    # Tiny one-time prep in the wrapper (free XLA plumbing):
    #   w2[o, k*C_in + i] = weight[o, i, k]
    w2 = jnp.transpose(weight, (0, 2, 1)).reshape(c_out, K * c_in)
    w2 = w2.astype(compute_dtype)
    b_col = bias.reshape(c_out, 1).astype(jnp.float32)
    #   x2[i, b*L + j] = x[b, i, j]   (batch folded onto lanes)
    x2 = jnp.transpose(x_ncl, (1, 0, 2)).reshape(c_in, B * L).astype(compute_dtype)

    kcin = K * c_in
    bl = B * L

    flops = 2 * B * c_out * K * c_in * L
    bytes_accessed = (x2.size * x2.dtype.itemsize
                      + w2.size * w2.dtype.itemsize
                      + b_col.size * 4
                      + c_out * bl * jnp.dtype(x_ncl.dtype).itemsize)

    f32 = jnp.dtype(compute_dtype) == jnp.dtype(jnp.float32)
    kernel = functools.partial(
        _conv1d_im2col_kernel,
        seq_len=L,
        precision=lax.Precision.HIGHEST if f32 else lax.Precision.DEFAULT,
    )

    # Note: if L / B are ever scaled up, split L across a "parallel" grid axis
    # (with a K-1 = 10 halo in the index_map) and size the xcol tile against
    # VMEM (~64 MiB on v7x, ~128 MiB on v5e/v6e); at these shapes a single fat
    # step is optimal and any split is a regression.
    # TODO(synk): fuse this sub-microsecond, ~22 KB op into its producer /
    # consumer kernel — per-call launch overhead dominates wall time.
    out2 = pl.pallas_call(
        kernel,
        out_shape=jax.ShapeDtypeStruct((c_out, bl), x_ncl.dtype),
        grid_spec=pltpu.PrefetchScalarGridSpec(
            num_scalar_prefetch=0,
            grid=(1,),                       # one fat step for the whole problem
            in_specs=[
                pl.BlockSpec((c_in, bl), lambda i: (0, 0)),
                pl.BlockSpec((c_out, kcin), lambda i: (0, 0)),
                pl.BlockSpec((c_out, 1), lambda i: (0, 0)),
            ],
            out_specs=pl.BlockSpec((c_out, bl), lambda i: (0, 0)),
            scratch_shapes=[pltpu.VMEM((kcin, bl), compute_dtype)],
        ),
        compiler_params=pltpu.CompilerParams(
            dimension_semantics=("arbitrary",)),
        cost_estimate=pl.CostEstimate(flops=flops, transcendentals=0,
                                      bytes_accessed=int(bytes_accessed)),
    )(x2, w2, b_col)

    # Unfold lanes back to PyTorch NCL layout: (C_out, B*L) -> (B, C_out, L).
    return jnp.transpose(out2.reshape(c_out, B, L), (1, 0, 2))


def _reference_conv1d(x_ncl, weight, bias):
    """Pure-JAX reference (lax.conv_general_dilated) for correctness check."""
    out = lax.conv_general_dilated(
        x_ncl, weight,
        window_strides=(1,),
        padding=[(PADDING, PADDING)],
        dimension_numbers=("NCH", "OIH", "NCH"),
    )
    return out + bias[None, :, None]


if __name__ == "__main__":
    # Module defaults: orig_dim=12, embed_dim=32. Small sequence length.
    orig_dim = 12
    embed_dim = 32
    batch = 2
    seq = 16

    key = jax.random.PRNGKey(0)
    kx, kw, kb = jax.random.split(key, 3)

    # Deterministic synthetic parameters (PyTorch Conv1d weight layout (O, I, K)).
    weight = jax.random.normal(kw, (orig_dim, embed_dim, KERNEL_SIZE),
                               dtype=jnp.float32) * 0.05
    bias = jax.random.normal(kb, (orig_dim,), dtype=jnp.float32) * 0.01

    # Input in PyTorch NCL layout: (batch, embed_dim, seq).
    x = jax.random.normal(kx, (batch, embed_dim, seq), dtype=jnp.float32)

    out = projection_forward(x, weight, bias)
    out = jax.block_until_ready(out)

    ref = _reference_conv1d(x, weight, bias)
    assert out.shape == (batch, orig_dim, seq)
    # f32 path (default compute_dtype) with precision=HIGHEST meets 1e-4;
    # loosen to ~5e-3 if compute_dtype=bfloat16 is used on v6e/v7x.
    assert jnp.allclose(out, ref, atol=1e-4, rtol=1e-4), "mismatch vs reference"

    print("KERNEL_OK")
</pallas_src>

<mosaic_0001>
module attributes {stable_mosaic.version = 11 : i64} {
  func.func @_conv1d_im2col_kernel(%arg0: i32, %arg1: memref<32x32xf32, #tpu.memory_space<vmem>>, %arg2: memref<12x352xf32, #tpu.memory_space<vmem>>, %arg3: memref<12x1xf32, #tpu.memory_space<vmem>>, %arg4: memref<12x32xf32, #tpu.memory_space<vmem>>, %arg5: memref<352x32xf32, #tpu.memory_space<vmem>>) attributes {dimension_semantics = [#tpu.dimension_semantics<arbitrary>], iteration_bounds = array<i64: 1>, scalar_prefetch = 0 : i64, scratch_operands = 1 : i64, tpu.core_type = #tpu.core_type<tc>, window_params = [{pipeline_mode = #tpu.pipeline_mode<synchronous>, transform_indices = @transform_0, window_bounds = array<i64: 32, 32>}, {pipeline_mode = #tpu.pipeline_mode<synchronous>, transform_indices = @transform_1, window_bounds = array<i64: 12, 352>}, {pipeline_mode = #tpu.pipeline_mode<synchronous>, transform_indices = @transform_2, window_bounds = array<i64: 12, 1>}, {pipeline_mode = #tpu.pipeline_mode<synchronous>, transform_indices = @transform_3, window_bounds = array<i64: 12, 32>}]} {
    %c0 = arith.constant 0 : index
    %c0_0 = arith.constant 0 : index
    %0 = vector.load %arg1[%c0, %c0_0] : memref<32x32xf32, #tpu.memory_space<vmem>>, vector<32x32xf32>
    %1 = tpu.iota {dimensions = array<i32: 1>} : vector<32x32xi32>
    %c16_i32 = arith.constant 16 : i32
    %c0_i32 = arith.constant 0 : i32
    %2 = arith.cmpi eq, %c16_i32, %c0_i32 : i32
    %c1_i32 = arith.constant 1 : i32
    %3 = arith.select %2, %c1_i32, %c16_i32 : i32
    %4 = vector.broadcast %3 : i32 to vector<32x32xi32>
    %5 = arith.remsi %1, %4 : vector<32x32xi32>
    %c0_i32_1 = arith.constant 0 : i32
    %6 = vector.broadcast %c0_i32_1 : i32 to vector<32x32xi32>
    %7 = arith.cmpi ne, %5, %6 : vector<32x32xi32>
    %c0_i32_2 = arith.constant 0 : i32
    %8 = vector.broadcast %c0_i32_2 : i32 to vector<32x32xi32>
    %9 = arith.cmpi slt, %5, %8 : vector<32x32xi32>
    %c0_i32_3 = arith.constant 0 : i32
    %10 = arith.cmpi slt, %3, %c0_i32_3 : i32
    %11 = vector.broadcast %10 : i1 to vector<32x32xi1>
    %12 = vector.broadcast %11 : vector<32x32xi1> to vector<32x32xi1>
    %13 = arith.xori %9, %12 : vector<32x32xi1>
    %14 = arith.andi %13, %7 : vector<32x32xi1>
    %15 = vector.broadcast %3 : i32 to vector<32x32xi32>
    %16 = arith.addi %5, %15 : vector<32x32xi32>
    %17 = arith.select %14, %16, %5 : vector<32x32xi1>, vector<32x32xi32>
    %c5_i32 = arith.constant 5 : i32
    %18 = tpu.dynamic_rotate %0 by %c5_i32 dim 1 : vector<32x32xf32>, i32 -> vector<32x32xf32>
    %c5_i32_4 = arith.constant 5 : i32
    %19 = vector.broadcast %c5_i32_4 : i32 to vector<32x32xi32>
    %20 = arith.cmpi sge, %17, %19 : vector<32x32xi32>
    %c21_i32 = arith.constant 21 : i32
    %21 = vector.broadcast %c21_i32 : i32 to vector<32x32xi32>
    %22 = arith.cmpi slt, %17, %21 : vector<32x32xi32>
    %23 = arith.andi %20, %22 : vector<32x32xi1>
    %cst = arith.constant 0.000000e+00 : f32
    %24 = vector.broadcast %cst : f32 to vector<32x32xf32>
    %25 = arith.select %23, %18, %24 : vector<32x32xi1>, vector<32x32xf32>
    %c0_5 = arith.constant 0 : index
    %c0_6 = arith.constant 0 : index
    %26 = vector.load %arg5[%c0_5, %c0_6] : memref<352x32xf32, #tpu.memory_space<vmem>>, vector<32x32xf32>
    tpu.vector_store %arg5[%c0_5, %c0_6], %25 {strides = array<i32>} : memref<352x32xf32, #tpu.memory_space<vmem>>, vector<32x32xf32>,
    %c4_i32 = arith.constant 4 : i32
    %27 = tpu.dynamic_rotate %0 by %c4_i32 dim 1 : vector<32x32xf32>, i32 -> vector<32x32xf32>
    %c4_i32_7 = arith.constant 4 : i32
    %28 = vector.broadcast %c4_i32_7 : i32 to vector<32x32xi32>
    %29 = arith.cmpi sge, %17, %28 : vector<32x32xi32>
    %c20_i32 = arith.constant 20 : i32
    %30 = vector.broadcast %c20_i32 : i32 to vector<32x32xi32>
    %31 = arith.cmpi slt, %17, %30 : vector<32x32xi32>
    %32 = arith.andi %29, %31 : vector<32x32xi1>
    %cst_8 = arith.constant 0.000000e+00 : f32
    %33 = vector.broadcast %cst_8 : f32 to vector<32x32xf32>
    %34 = arith.select %32, %27, %33 : vector<32x32xi1>, vector<32x32xf32>
    %c32 = arith.constant 32 : index
    %c0_9 = arith.constant 0 : index
    %35 = vector.load %arg5[%c32, %c0_9] : memref<352x32xf32, #tpu.memory_space<vmem>>, vector<32x32xf32>
    tpu.vector_store %arg5[%c32, %c0_9], %34 {strides = array<i32>} : memref<352x32xf32, #tpu.memory_space<vmem>>, vector<32x32xf32>,
    %c3_i32 = arith.constant 3 : i32
    %36 = tpu.dynamic_rotate %0 by %c3_i32 dim 1 : vector<32x32xf32>, i32 -> vector<32x32xf32>
    %c3_i32_10 = arith.constant 3 : i32
    %37 = vector.broadcast %c3_i32_10 : i32 to vector<32x32xi32>
    %38 = arith.cmpi sge, %17, %37 : vector<32x32xi32>
    %c19_i32 = arith.constant 19 : i32
    %39 = vector.broadcast %c19_i32 : i32 to vector<32x32xi32>
    %40 = arith.cmpi slt, %17, %39 : vector<32x32xi32>
    %41 = arith.andi %38, %40 : vector<32x32xi1>
    %cst_11 = arith.constant 0.000000e+00 : f32
    %42 = vector.broadcast %cst_11 : f32 to vector<32x32xf32>
    %43 = arith.select %41, %36, %42 : vector<32x32xi1>, vector<32x32xf32>
    %c64 = arith.constant 64 : index
    %c0_12 = arith.constant 0 : index
    %44 = vector.load %arg5[%c64, %c0_12] : memref<352x32xf32, #tpu.memory_space<vmem>>, vector<32x32xf32>
    tpu.vector_store %arg5[%c64, %c0_12], %43 {strides = array<i32>} : memref<352x32xf32, #tpu.memory_space<vmem>>, vector<32x32xf32>,
    %c2_i32 = arith.constant 2 : i32
    %45 = tpu.dynamic_rotate %0 by %c2_i32 dim 1 : vector<32x32xf32>, i32 -> vector<32x32xf32>
    %c2_i32_13 = arith.constant 2 : i32
    %46 = vector.broadcast %c2_i32_13 : i32 to vector<32x32xi32>
    %47 = arith.cmpi sge, %17, %46 : vector<32x32xi32>
    %c18_i32 = arith.constant 18 : i32
    %48 = vector.broadcast %c18_i32 : i32 to vector<32x32xi32>
    %49 = arith.cmpi slt, %17, %48 : vector<32x32xi32>
    %50 = arith.andi %47, %49 : vector<32x32xi1>
    %cst_14 = arith.constant 0.000000e+00 : f32
    %51 = vector.broadcast %cst_14 : f32 to vector<32x32xf32>
    %52 = arith.select %50, %45, %51 : vector<32x32xi1>, vector<32x32xf32>
    %c96 = arith.constant 96 : index
    %c0_15 = arith.constant 0 : index
    %53 = vector.load %arg5[%c96, %c0_15] : memref<352x32xf32, #tpu.memory_space<vmem>>, vector<32x32xf32>
    tpu.vector_store %arg5[%c96, %c0_15], %52 {strides = array<i32>} : memref<352x32xf32, #tpu.memory_space<vmem>>, vector<32x32xf32>,
    %c1_i32_16 = arith.constant 1 : i32
    %54 = tpu.dynamic_rotate %0 by %c1_i32_16 dim 1 : vector<32x32xf32>, i32 -> vector<32x32xf32>
    %c1_i32_17 = arith.constant 1 : i32
    %55 = vector.broadcast %c1_i32_17 : i32 to vector<32x32xi32>
    %56 = arith.cmpi sge, %17, %55 : vector<32x32xi32>
    %c17_i32 = arith.constant 17 : i32
    %57 = vector.broadcast %c17_i32 : i32 to vector<32x32xi32>
    %58 = arith.cmpi slt, %17, %57 : vector<32x32xi32>
    %59 = arith.andi %56, %58 : vector<32x32xi1>
    %cst_18 = arith.constant 0.000000e+00 : f32
    %60 = vector.broadcast %cst_18 : f32 to vector<32x32xf32>
    %61 = arith.select %59, %54, %60 : vector<32x32xi1>, vector<32x32xf32>
    %c128 = arith.constant 128 : index
    %c0_19 = arith.constant 0 : index
    %62 = vector.load %arg5[%c128, %c0_19] : memref<352x32xf32, #tpu.memory_space<vmem>>, vector<32x32xf32>
    tpu.vector_store %arg5[%c128, %c0_19], %61 {strides = array<i32>} : memref<352x32xf32, #tpu.memory_space<vmem>>, vector<32x32xf32>,
    %c160 = arith.constant 160 : index
    %c0_20 = arith.constant 0 : index
    %63 = vector.load %arg5[%c160, %c0_20] : memref<352x32xf32, #tpu.memory_space<vmem>>, vector<32x32xf32>
    tpu.vector_store %arg5[%c160, %c0_20], %0 {strides = array<i32>} : memref<352x32xf32, #tpu.memory_space<vmem>>, vector<32x32xf32>,
    %c31_i32 = arith.constant 31 : i32
    %64 = tpu.dynamic_rotate %0 by %c31_i32 dim 1 : vector<32x32xf32>, i32 -> vector<32x32xf32>
    %c-1_i32 = arith.constant -1 : i32
    %65 = vector.broadcast %c-1_i32 : i32 to vector<32x32xi32>
    %66 = arith.cmpi sge, %17, %65 : vector<32x32xi32>
    %c15_i32 = arith.constant 15 : i32
    %67 = vector.broadcast %c15_i32 : i32 to vector<32x32xi32>
    %68 = arith.cmpi slt, %17, %67 : vector<32x32xi32>
    %69 = arith.andi %66, %68 : vector<32x32xi1>
    %cst_21 = arith.constant 0.000000e+00 : f32
    %70 = vector.broadcast %cst_21 : f32 to vector<32x32xf32>
    %71 = arith.select %69, %64, %70 : vector<32x32xi1>, vector<32x32xf32>
    %c192 = arith.constant 192 : index
    %c0_22 = arith.constant 0 : index
    %72 = vector.load %arg5[%c192, %c0_22] : memref<352x32xf32, #tpu.memory_space<vmem>>, vector<32x32xf32>
    tpu.vector_store %arg5[%c192, %c0_22], %71 {strides = array<i32>} : memref<352x32xf32, #tpu.memory_space<vmem>>, vector<32x32xf32>,
    %c30_i32 = arith.constant 30 : i32
    %73 = tpu.dynamic_rotate %0 by %c30_i32 dim 1 : vector<32x32xf32>, i32 -> vector<32x32xf32>
    %c-2_i32 = arith.constant -2 : i32
    %74 = vector.broadcast %c-2_i32 : i32 to vector<32x32xi32>
    %75 = arith.cmpi sge, %17, %74 : vector<32x32xi32>
    %c14_i32 = arith.constant 14 : i32
    %76 = vector.broadcast %c14_i32 : i32 to vector<32x32xi32>
    %77 = arith.cmpi slt, %17, %76 : vector<32x32xi32>
    %78 = arith.andi %75, %77 : vector<32x32xi1>
    %cst_23 = arith.constant 0.000000e+00 : f32
    %79 = vector.broadcast %cst_23 : f32 to vector<32x32xf32>
    %80 = arith.select %78, %73, %79 : vector<32x32xi1>, vector<32x32xf32>
    %c224 = arith.constant 224 : index
    %c0_24 = arith.constant 0 : index
    %81 = vector.load %arg5[%c224, %c0_24] : memref<352x32xf32, #tpu.memory_space<vmem>>, vector<32x32xf32>
    tpu.vector_store %arg5[%c224, %c0_24], %80 {strides = array<i32>} : memref<352x32xf32, #tpu.memory_space<vmem>>, vector<32x32xf32>,
    %c29_i32 = arith.constant 29 : i32
    %82 = tpu.dynamic_rotate %0 by %c29_i32 dim 1 : vector<32x32xf32>, i32 -> vector<32x32xf32>
    %c-3_i32 = arith.constant -3 : i32
    %83 = vector.broadcast %c-3_i32 : i32 to vector<32x32xi32>
    %84 = arith.cmpi sge, %17, %83 : vector<32x32xi32>
    %c13_i32 = arith.constant 13 : i32
    %85 = vector.broadcast %c13_i32 : i32 to vector<32x32xi32>
    %86 = arith.cmpi slt, %17, %85 : vector<32x32xi32>
    %87 = arith.andi %84, %86 : vector<32x32xi1>
    %cst_25 = arith.constant 0.000000e+00 : f32
    %88 = vector.broadcast %cst_25 : f32 to vector<32x32xf32>
    %89 = arith.select %87, %82, %88 : vector<32x32xi1>, vector<32x32xf32>
    %c256 = arith.constant 256 : index
    %c0_26 = arith.constant 0 : index
    %90 = vector.load %arg5[%c256, %c0_26] : memref<352x32xf32, #tpu.memory_space<vmem>>, vector<32x32xf32>
    tpu.vector_store %arg5[%c256, %c0_26], %89 {strides = array<i32>} : memref<352x32xf32, #tpu.memory_space<vmem>>, vector<32x32xf32>,
    %c28_i32 = arith.constant 28 : i32
    %91 = tpu.dynamic_rotate %0 by %c28_i32 dim 1 : vector<32x32xf32>, i32 -> vector<32x32xf32>
    %c-4_i32 = arith.constant -4 : i32
    %92 = vector.broadcast %c-4_i32 : i32 to vector<32x32xi32>
    %93 = arith.cmpi sge, %17, %92 : vector<32x32xi32>
    %c12_i32 = arith.constant 12 : i32
    %94 = vector.broadcast %c12_i32 : i32 to vector<32x32xi32>
    %95 = arith.cmpi slt, %17, %94 : vector<32x32xi32>
    %96 = arith.andi %93, %95 : vector<32x32xi1>
    %cst_27 = arith.constant 0.000000e+00 : f32
    %97 = vector.broadcast %cst_27 : f32 to vector<32x32xf32>
    %98 = arith.select %96, %91, %97 : vector<32x32xi1>, vector<32x32xf32>
    %c288 = arith.constant 288 : index
    %c0_28 = arith.constant 0 : index
    %99 = vector.load %arg5[%c288, %c0_28] : memref<352x32xf32, #tpu.memory_space<vmem>>, vector<32x32xf32>
    tpu.vector_store %arg5[%c288, %c0_28], %98 {strides = array<i32>} : memref<352x32xf32, #tpu.memory_space<vmem>>, vector<32x32xf32>,
    %c27_i32 = arith.constant 27 : i32
    %100 = tpu.dynamic_rotate %0 by %c27_i32 dim 1 : vector<32x32xf32>, i32 -> vector<32x32xf32>
    %c-5_i32 = arith.constant -5 : i32
    %101 = vector.broadcast %c-5_i32 : i32 to vector<32x32xi32>
    %102 = arith.cmpi sge, %17, %101 : vector<32x32xi32>
    %c11_i32 = arith.constant 11 : i32
    %103 = vector.broadcast %c11_i32 : i32 to vector<32x32xi32>
    %104 = arith.cmpi slt, %17, %103 : vector<32x32xi32>
    %105 = arith.andi %102, %104 : vector<32x32xi1>
    %cst_29 = arith.constant 0.000000e+00 : f32
    %106 = vector.broadcast %cst_29 : f32 to vector<32x32xf32>
    %107 = arith.select %105, %100, %106 : vector<32x32xi1>, vector<32x32xf32>
    %c320 = arith.constant 320 : index
    %c0_30 = arith.constant 0 : index
    %108 = vector.load %arg5[%c320, %c0_30] : memref<352x32xf32, #tpu.memory_space<vmem>>, vector<32x32xf32>
    tpu.vector_store %arg5[%c320, %c0_30], %107 {strides = array<i32>} : memref<352x32xf32, #tpu.memory_space<vmem>>, vector<32x32xf32>,
    %c0_31 = arith.constant 0 : index
    %c0_32 = arith.constant 0 : index
    %109 = vector.load %arg2[%c0_31, %c0_32] : memref<12x352xf32, #tpu.memory_space<vmem>>, vector<12x352xf32>
    %c0_33 = arith.constant 0 : index
    %c0_34 = arith.constant 0 : index
    %110 = vector.load %arg5[%c0_33, %c0_34] : memref<352x32xf32, #tpu.memory_space<vmem>>, vector<352x32xf32>
    %cst_35 = arith.constant dense<0.000000e+00> : vector<12x32xf32>
    %111 = tpu.matmul %109, %110, %cst_35 {dimension_numbers = #tpu.dot_dimension_numbers<[1], [0], [0], [1], [0, 0, 1, 1], [], []>, precision = #tpu.contract_precision<fp32>} : vector<12x352xf32>, vector<352x32xf32>, vector<12x32xf32> -> vector<12x32xf32>
    %c0_36 = arith.constant 0 : index
    %c0_37 = arith.constant 0 : index
    %112 = vector.load %arg3[%c0_36, %c0_37] : memref<12x1xf32, #tpu.memory_space<vmem>>, vector<12x1xf32>
    %113 = vector.shape_cast %112 : vector<12x1xf32> to vector<12x1xf32>
    %114 = vector.broadcast %113 : vector<12x1xf32> to vector<12x32xf32>
    %115 = arith.addf %111, %114 : vector<12x32xf32>
    %c0_38 = arith.constant 0 : index
    %c0_39 = arith.constant 0 : index
    %116 = vector.load %arg4[%c0_38, %c0_39] : memref<12x32xf32, #tpu.memory_space<vmem>>, vector<12x32xf32>
    tpu.vector_store %arg4[%c0_38, %c0_39], %115 {strides = array<i32>} : memref<12x32xf32, #tpu.memory_space<vmem>>, vector<12x32xf32>,
    return
  }
  func.func @transform_0(%arg0: i32) -> (i32, i32) {
    %c0_i32 = arith.constant 0 : i32
    %c0_i32_0 = arith.constant 0 : i32
    %c0_i32_1 = arith.constant 0 : i32
    return %c0_i32, %c0_i32_0 : i32, i32
  }
  func.func @transform_1(%arg0: i32) -> (i32, i32) {
    %c0_i32 = arith.constant 0 : i32
    %c0_i32_0 = arith.constant 0 : i32
    %c0_i32_1 = arith.constant 0 : i32
    return %c0_i32, %c0_i32_0 : i32, i32
  }
  func.func @transform_2(%arg0: i32) -> (i32, i32) {
    %c0_i32 = arith.constant 0 : i32
    %c0_i32_0 = arith.constant 0 : i32
    %c0_i32_1 = arith.constant 0 : i32
    return %c0_i32, %c0_i32_0 : i32, i32
  }
  func.func @transform_3(%arg0: i32) -> (i32, i32) {
    %c0_i32 = arith.constant 0 : i32
    %c0_i32_0 = arith.constant 0 : i32
    %c0_i32_1 = arith.constant 0 : i32
    return %c0_i32, %c0_i32_0 : i32, i32
  }
}

</mosaic_0001>

<llo_original>
// kernel: tpu_custom_call.1
$region0: #{tpu_custom_call.1}
  #allocation0 [shape = 'u32[]', space=smem, size = 0x4, offset = 0x4, fixed_abs, tag = 'smem constant byte address 0x4 - core index']
  #allocation1 [shape = 'u32[144,128]{1,0:T(1,128)}', space=vmem, size = 0x12000, scoped, tag = 'internal scratch']
  #allocation2 [shape = 'f32[352,32]{1,0:T(8,128)}', space=vmem, size = 0x2c000, scoped, tag = 'scratch operand']
  %s0 = inlined_call_operand.hbm [shape: f32[32,32], index: 0, kind: input, shape index: {}]
  %s1 = inlined_call_operand.hbm [shape: f32[12,352], index: 1, kind: input, shape index: {}]
  %s2 = inlined_call_operand.vmem [shape: f32[12,1], index: 2, kind: input, shape index: {}]
  %s3 = inlined_call_operand.hbm [shape: f32[12,32], index: 3, kind: output, shape index: {}]
  %s4 = sld [smem:[#allocation0]]
  $region30: #{tpu_custom_call.1} parent=0
    _
  %s6 = ssub.s32 1, %s4
  %s7 = scalar_select 0, %s6, %s4
  $region1: #{tpu_custom_call.1} parent=0
    #allocation3 [shape = 'u8[16384]{0}', space=vmem, size = 0x4000, scoped, tag = 'input window, operand 0, single buffered']
    #allocation4 [shape = 's32[1]{0}', space=sflag, size = 0x4, scoped, tag = 'scoped memory for tpu_custom_call.1']
    #allocation5 [shape = 's32[1]{0}', space=sflag, size = 0x4, scoped, tag = 'scoped memory for tpu_custom_call.1']
    #allocation6 [shape = 'u8[24576]{0}', space=vmem, size = 0x6000, scoped, tag = 'input window, operand 1, single buffered']
    #allocation7 [shape = 's32[1]{0}', space=sflag, size = 0x4, scoped, tag = 'scoped memory for tpu_custom_call.1']
    #allocation8 [shape = 'u8[8192]{0}', space=vmem, size = 0x2000, scoped, tag = 'output window, operand 0, single buffered']
    %8 = vsyncpa [#allocation4], 0
    %9 = vsyncpa [#allocation7], 0
    %10 = vsyncpa [#allocation5], 0
    // Predicated region
    $region2: #{tpu_custom_call.1} parent=1 // pred_check
      _
    $region3: #{tpu_custom_call.1} parent=1 // pred_check_branch
      %12 = sbr.rel (0) target = $region5
    $region4: #{tpu_custom_call.1} parent=1 // pred_region
      %s14 = ssub.s32 512, 512
      %15 = vsyncadd [#allocation4], %s14
      %s16 = sshll.u32 [#allocation3], 4
      %s17 = int_to_ptr.vmem [resolvable:$true] %s16
      %22 = dma.hbm_to_vmem [thread:$0]  %s0, 512, %s17, [#allocation4], 128, 128, 8
    $region5: #{tpu_custom_call.1} parent=1 // pred_fallthru
      _
    // Predicated region
    $region6: #{tpu_custom_call.1} parent=1 // pred_check
      _
    $region7: #{tpu_custom_call.1} parent=1 // pred_check_branch
      %24 = sbr.rel (0) target = $region9
    $region8: #{tpu_custom_call.1} parent=1 // pred_region
      %s26 = ssub.s32 768, 768
      %27 = vsyncadd [#allocation7], %s26
      %s28 = sshll.u32 [#allocation6], 4
      %s29 = int_to_ptr.vmem [resolvable:$true] %s28
      %34 = dma.hbm_to_vmem [thread:$0]  %s1, 768, %s29, [#allocation7], 384, 384, 24
    $region9: #{tpu_custom_call.1} parent=1 // pred_fallthru
      _
    // Predicated region
    $region10: #{tpu_custom_call.1} parent=1 // pred_check
      _
    $region11: #{tpu_custom_call.1} parent=1 // pred_check_branch
      %36 = sbr.rel (0) target = $region13
    $region12: #{tpu_custom_call.1} parent=1 // pred_region
      _
    $region13: #{tpu_custom_call.1} parent=1 // pred_fallthru
      _
    // Predicated region
    $region14: #{tpu_custom_call.1} parent=1 // pred_check
      _
    $region15: #{tpu_custom_call.1} parent=1 // pred_check_branch
      %38 = sbr.rel (0) target = $region17
    $region16: #{tpu_custom_call.1} parent=1 // pred_region
      %39 = dma.done [#allocation4], 512
    $region17: #{tpu_custom_call.1} parent=1 // pred_fallthru
      _
    // Predicated region
    $region18: #{tpu_custom_call.1} parent=1 // pred_check
      _
    $region19: #{tpu_custom_call.1} parent=1 // pred_check_branch
      %41 = sbr.rel (0) target = $region21
    $region20: #{tpu_custom_call.1} parent=1 // pred_region
      %42 = dma.done [#allocation7], 768
    $region21: #{tpu_custom_call.1} parent=1 // pred_fallthru
      _
    %v43 = vld [vmem:[#allocation3] sm:$0xff]
    %v44 = vld [vmem:[#allocation3 + $0x8] sm:$0xff]
    %v45 = vld [vmem:[#allocation3 + $0x10] sm:$0xff]
    %v46 = vld [vmem:[#allocation3 + $0x18] sm:$0xff]
    %v47 = vlaneseq
    %v48 = vand.u32 %v47, 127
    %vm49 = vcmp.lt.s32.totalorder %v48, 0
    %v50 = vsub.s32 0, %v48
    %v51 = vsel %vm49, %v50, %v48
    %v52 = vshrl.u32 %v51, 4
    %v53 = vand.u32 %v51, 15
    %v54 = vsub.s32 0, %v53
    %v55 = vsel %vm49, %v54, %v53
    %vm56 = vcmp.ne.s32.totalorder %v55, 0
    %vm57 = vcmp.lt.s32.totalorder %v55, 0
    %vm58 = vmand %vm57, %vm56
    %v59 = vadd.s32 %v55, 16
    %v60 = vsel %vm58, %v59, %v55
    %vm61 = vcmask 1047808
    %62 = vrot.lane.b32.xlu0 %v43, 32
    %v63 = vpop.permute.xlu0 %62
    %v64 = vsel %vm61, %v63, %v43
    %65 = vrot.lane.b32.xlu0 %v44, 32
    %v66 = vpop.permute.xlu0 %65
    %v67 = vsel %vm61, %v66, %v44
    %68 = vrot.lane.b32.xlu0 %v45, 32
    %v69 = vpop.permute.xlu0 %68
    %v70 = vsel %vm61, %v69, %v45
    %71 = vrot.lane.b32.xlu0 %v46, 32
    %v72 = vpop.permute.xlu0 %71
    %v73 = vsel %vm61, %v72, %v46
    %74 = vrot.lane.b32.xlu0 %v64, 32
    %v75 = vpop.permute.xlu0 %74
    %76 = vrot.lane.b32.xlu0 %v67, 32
    %v77 = vpop.permute.xlu0 %76
    %78 = vrot.lane.b32.xlu0 %v70, 32
    %v79 = vpop.permute.xlu0 %78
    %80 = vrot.lane.b32.xlu0 %v73, 32
    %v81 = vpop.permute.xlu0 %80
    %v82 = vsel %vm61, %v75, %v43
    %v83 = vsel %vm61, %v77, %v44
    %v84 = vsel %vm61, %v79, %v45
    %v85 = vsel %vm61, %v81, %v46
    %vm86 = vcmp.ge.s32.totalorder %v60, 5
    %vm87 = vcmp.lt.s32.totalorder %v60, 21
    %vm88 = vmand %vm86, %vm87
    %93 = vrot.lane.b32.xlu0 %v82, 101
    %v94 = vpop.permute.xlu0 %93
    %95 = vrot.lane.b32.xlu0 %v83, 101
    %v96 = vpop.permute.xlu0 %95
    %97 = vrot.lane.b32.xlu0 %v84, 101
    %v98 = vpop.permute.xlu0 %97
    %99 = vrot.lane.b32.xlu0 %v85, 101
    %v100 = vpop.permute.xlu0 %99
    %v105 = vsel %vm88, %v94, 0.0
    %v106 = vsel %vm88, %v96, 0.0
    %v107 = vsel %vm88, %v98, 0.0
    %v108 = vsel %vm88, %v100, 0.0
    %vm109 = vcmask 261120
    %110 = vst.msk [vmem:[#allocation2] sm:$0xff] %vm109, %v105
    %111 = vst.msk [vmem:[#allocation2 + $0x8] sm:$0xff] %vm109, %v106
    %112 = vst.msk [vmem:[#allocation2 + $0x10] sm:$0xff] %vm109, %v107
    %113 = vst.msk [vmem:[#allocation2 + $0x18] sm:$0xff] %vm109, %v108
    %vm114 = vcmp.ge.s32.totalorder %v60, 4
    %vm115 = vcmp.lt.s32.totalorder %v60, 20
    %vm116 = vmand %vm114, %vm115
    %117 = vrot.lane.b32.xlu0 %v82, 100
    %v118 = vpop.permute.xlu0 %117
    %119 = vrot.lane.b32.xlu0 %v83, 100
    %v120 = vpop.permute.xlu0 %119
    %121 = vrot.lane.b32.xlu0 %v84, 100
    %v122 = vpop.permute.xlu0 %121
    %123 = vrot.lane.b32.xlu0 %v85, 100
    %v124 = vpop.permute.xlu0 %123
    %v129 = vsel %vm116, %v118, 0.0
    %v130 = vsel %vm116, %v120, 0.0
    %v131 = vsel %vm116, %v122, 0.0
    %v132 = vsel %vm116, %v124, 0.0
    %133 = vst.msk [vmem:[#allocation2 + $0x20] sm:$0xff] %vm109, %v129
    %134 = vst.msk [vmem:[#allocation2 + $0x28] sm:$0xff] %vm109, %v130
    %135 = vst.msk [vmem:[#allocation2 + $0x30] sm:$0xff] %vm109, %v131
    %136 = vst.msk [vmem:[#allocation2 + $0x38] sm:$0xff] %vm109, %v132
    %vm137 = vcmp.ge.s32.totalorder %v60, 3
    %vm138 = vcmp.lt.s32.totalorder %v60, 19
    %vm139 = vmand %vm137, %vm138
    %140 = vrot.lane.b32.xlu0 %v82, 99
    %v141 = vpop.permute.xlu0 %140
    %142 = vrot.lane.b32.xlu0 %v83, 99
    %v143 = vpop.permute.xlu0 %142
    %144 = vrot.lane.b32.xlu0 %v84, 99
    %v145 = vpop.permute.xlu0 %144
    %146 = vrot.lane.b32.xlu0 %v85, 99
    %v147 = vpop.permute.xlu0 %146
    %v152 = vsel %vm139, %v141, 0.0
    %v153 = vsel %vm139, %v143, 0.0
    %v154 = vsel %vm139, %v145, 0.0
    %v155 = vsel %vm139, %v147, 0.0
    %156 = vst.msk [vmem:[#allocation2 + $0x40] sm:$0xff] %vm109, %v152
    %157 = vst.msk [vmem:[#allocation2 + $0x48] sm:$0xff] %vm109, %v153
    %158 = vst.msk [vmem:[#allocation2 + $0x50] sm:$0xff] %vm109, %v154
    %159 = vst.msk [vmem:[#allocation2 + $0x58] sm:$0xff] %vm109, %v155
    %vm160 = vcmp.ge.s32.totalorder %v60, 2
    %vm161 = vcmp.lt.s32.totalorder %v60, 18
    %vm162 = vmand %vm160, %vm161
    %163 = vrot.lane.b32.xlu0 %v82, 98
    %v164 = vpop.permute.xlu0 %163
    %165 = vrot.lane.b32.xlu0 %v83, 98
    %v166 = vpop.permute.xlu0 %165
    %167 = vrot.lane.b32.xlu0 %v84, 98
    %v168 = vpop.permute.xlu0 %167
    %169 = vrot.lane.b32.xlu0 %v85, 98
    %v170 = vpop.permute.xlu0 %169
    %v175 = vsel %vm162, %v164, 0.0
    %v176 = vsel %vm162, %v166, 0.0
    %v177 = vsel %vm162, %v168, 0.0
    %v178 = vsel %vm162, %v170, 0.0
    %179 = vst.msk [vmem:[#allocation2 + $0x60] sm:$0xff] %vm109, %v175
    %180 = vst.msk [vmem:[#allocation2 + $0x68] sm:$0xff] %vm109, %v176
    %181 = vst.msk [vmem:[#allocation2 + $0x70] sm:$0xff] %vm109, %v177
    %182 = vst.msk [vmem:[#allocation2 + $0x78] sm:$0xff] %vm109, %v178
    %vm183 = vcmp.ge.s32.totalorder %v60, 1
    %vm184 = vcmp.lt.s32.totalorder %v60, 17
    %vm185 = vmand %vm183, %vm184
    %186 = vrot.lane.b32.xlu0 %v82, 97
    %v187 = vpop.permute.xlu0 %186
    %188 = vrot.lane.b32.xlu0 %v83, 97
    %v189 = vpop.permute.xlu0 %188
    %190 = vrot.lane.b32.xlu0 %v84, 97
    %v191 = vpop.permute.xlu0 %190
    %192 = vrot.lane.b32.xlu0 %v85, 97
    %v193 = vpop.permute.xlu0 %192
    %v198 = vsel %vm185, %v187, 0.0
    %v199 = vsel %vm185, %v189, 0.0
    %v200 = vsel %vm185, %v191, 0.0
    %v201 = vsel %vm185, %v193, 0.0
    %202 = vst.msk [vmem:[#allocation2 + $0x80] sm:$0xff] %vm109, %v198
    %203 = vst.msk [vmem:[#allocation2 + $0x88] sm:$0xff] %vm109, %v199
    %204 = vst.msk [vmem:[#allocation2 + $0x90] sm:$0xff] %vm109, %v200
    %205 = vst.msk [vmem:[#allocation2 + $0x98] sm:$0xff] %vm109, %v201
    %206 = vst.msk [vmem:[#allocation2 + $0xa0] sm:$0xff] %vm109, %v43
    %207 = vst.msk [vmem:[#allocation2 + $0xa8] sm:$0xff] %vm109, %v44
    %208 = vst.msk [vmem:[#allocation2 + $0xb0] sm:$0xff] %vm109, %v45
    %209 = vst.msk [vmem:[#allocation2 + $0xb8] sm:$0xff] %vm109, %v46
    %vm210 = vcmp.ge.s32.totalorder %v60, 4294967295
    %vm211 = vcmp.lt.s32.totalorder %v60, 15
    %vm212 = vmand %vm210, %vm211
    %213 = vrot.lane.b32.xlu0 %v82, 127
    %v214 = vpop.permute.xlu0 %213
    %215 = vrot.lane.b32.xlu0 %v83, 127
    %v216 = vpop.permute.xlu0 %215
    %217 = vrot.lane.b32.xlu0 %v84, 127
    %v218 = vpop.permute.xlu0 %217
    %219 = vrot.lane.b32.xlu0 %v85, 127
    %v220 = vpop.permute.xlu0 %219
    %v225 = vsel %vm212, %v214, 0.0
    %v226 = vsel %vm212, %v216, 0.0
    %v227 = vsel %vm212, %v218, 0.0
    %v228 = vsel %vm212, %v220, 0.0
    %229 = vst.msk [vmem:[#allocation2 + $0xc0] sm:$0xff] %vm109, %v225
    %230 = vst.msk [vmem:[#allocation2 + $0xc8] sm:$0xff] %vm109, %v226
    %231 = vst.msk [vmem:[#allocation2 + $0xd0] sm:$0xff] %vm109, %v227
    %232 = vst.msk [vmem:[#allocation2 + $0xd8] sm:$0xff] %vm109, %v228
    %vm233 = vcmp.ge.s32.totalorder %v60, 4294967294
    %vm234 = vcmp.lt.s32.totalorder %v60, 14
    %vm235 = vmand %vm233, %vm234
    %236 = vrot.lane.b32.xlu0 %v82, 126
    %v237 = vpop.permute.xlu0 %236
    %238 = vrot.lane.b32.xlu0 %v83, 126
    %v239 = vpop.permute.xlu0 %238
    %240 = vrot.lane.b32.xlu0 %v84, 126
    %v241 = vpop.permute.xlu0 %240
    %242 = vrot.lane.b32.xlu0 %v85, 126
    %v243 = vpop.permute.xlu0 %242
    %v248 = vsel %vm235, %v237, 0.0
    %v249 = vsel %vm235, %v239, 0.0
    %v250 = vsel %vm235, %v241, 0.0
    %v251 = vsel %vm235, %v243, 0.0
    %252 = vst.msk [vmem:[#allocation2 + $0xe0] sm:$0xff] %vm109, %v248
    %253 = vst.msk [vmem:[#allocation2 + $0xe8] sm:$0xff] %vm109, %v249
    %254 = vst.msk [vmem:[#allocation2 + $0xf0] sm:$0xff] %vm109, %v250
    %255 = vst.msk [vmem:[#allocation2 + $0xf8] sm:$0xff] %vm109, %v251
    %vm256 = vcmp.ge.s32.totalorder %v60, 4294967293
    %vm257 = vcmp.lt.s32.totalorder %v60, 13
    %vm258 = vmand %vm256, %vm257
    %259 = vrot.lane.b32.xlu0 %v82, 125
    %v260 = vpop.permute.xlu0 %259
    %261 = vrot.lane.b32.xlu0 %v83, 125
    %v262 = vpop.permute.xlu0 %261
    %263 = vrot.lane.b32.xlu0 %v84, 125
    %v264 = vpop.permute.xlu0 %263
    %265 = vrot.lane.b32.xlu0 %v85, 125
    %v266 = vpop.permute.xlu0 %265
    %v271 = vsel %vm258, %v260, 0.0
    %v272 = vsel %vm258, %v262, 0.0
    %v273 = vsel %vm258, %v264, 0.0
    %v274 = vsel %vm258, %v266, 0.0
    %275 = vst.msk [vmem:[#allocation2 + $0x100] sm:$0xff] %vm109, %v271
    %276 = vst.msk [vmem:[#allocation2 + $0x108] sm:$0xff] %vm109, %v272
    %277 = vst.msk [vmem:[#allocation2 + $0x110] sm:$0xff] %vm109, %v273
    %278 = vst.msk [vmem:[#allocation2 + $0x118] sm:$0xff] %vm109, %v274
    %vm279 = vcmp.ge.s32.totalorder %v60, 4294967292
    %vm280 = vcmp.lt.s32.totalorder %v60, 12
    %vm281 = vmand %vm279, %vm280
    %282 = vrot.lane.b32.xlu0 %v82, 124
    %v283 = vpop.permute.xlu0 %282
    %284 = vrot.lane.b32.xlu0 %v83, 124
    %v285 = vpop.permute.xlu0 %284
    %286 = vrot.lane.b32.xlu0 %v84, 124
    %v287 = vpop.permute.xlu0 %286
    %288 = vrot.lane.b32.xlu0 %v85, 124
    %v289 = vpop.permute.xlu0 %288
    %v294 = vsel %vm281, %v283, 0.0
    %v295 = vsel %vm281, %v285, 0.0
    %v296 = vsel %vm281, %v287, 0.0
    %v297 = vsel %vm281, %v289, 0.0
    %298 = vst.msk [vmem:[#allocation2 + $0x120] sm:$0xff] %vm109, %v294
    %299 = vst.msk [vmem:[#allocation2 + $0x128] sm:$0xff] %vm109, %v295
    %300 = vst.msk [vmem:[#allocation2 + $0x130] sm:$0xff] %vm109, %v296
    %301 = vst.msk [vmem:[#allocation2 + $0x138] sm:$0xff] %vm109, %v297
    %vm302 = vcmp.ge.s32.totalorder %v60, 4294967291
    %vm303 = vcmp.lt.s32.totalorder %v60, 11
    %vm304 = vmand %vm302, %vm303
    %305 = vrot.lane.b32.xlu0 %v82, 123
    %v306 = vpop.permute.xlu0 %305
    %307 = vrot.lane.b32.xlu0 %v83, 123
    %v308 = vpop.permute.xlu0 %307
    %309 = vrot.lane.b32.xlu0 %v84, 123
    %v310 = vpop.permute.xlu0 %309
    %311 = vrot.lane.b32.xlu0 %v85, 123
    %v312 = vpop.permute.xlu0 %311
    %v317 = vsel %vm304, %v306, 0.0
    %v318 = vsel %vm304, %v308, 0.0
    %v319 = vsel %vm304, %v310, 0.0
    %v320 = vsel %vm304, %v312, 0.0
    %321 = vst.msk [vmem:[#allocation2 + $0x140] sm:$0xff] %vm109, %v317
    %322 = vst.msk [vmem:[#allocation2 + $0x148] sm:$0xff] %vm109, %v318
    %323 = vst.msk [vmem:[#allocation2 + $0x150] sm:$0xff] %vm109, %v319
    %324 = vst.msk [vmem:[#allocation2 + $0x158] sm:$0xff] %vm109, %v320
    %v325 = vld [vmem:[#allocation6] sm:$0xff]
    %v326 = vld [vmem:[#allocation6 + $0x8] sm:$0xff]
    %v327 = vld [vmem:[#allocation6 + $0x10] sm:$0xff]
    %v328 = vld [vmem:[#allocation6 + $0x18] sm:$0xf]
    %v329 = vld [vmem:[#allocation6 + $0x20] sm:$0xf]
    %v330 = vld [vmem:[#allocation6 + $0x28] sm:$0xf]
    %v331 = vld [vmem:[#allocation2] sm:$0xff]
    %v332 = vld [vmem:[#allocation2 + $0x8] sm:$0xff]
    %v333 = vld [vmem:[#allocation2 + $0x10] sm:$0xff]
    %v334 = vld [vmem:[#allocation2 + $0x18] sm:$0xff]
    %v335 = vld [vmem:[#allocation2 + $0x20] sm:$0xff]
    %v336 = vld [vmem:[#allocation2 + $0x28] sm:$0xff]
    %v337 = vld [vmem:[#allocation2 + $0x30] sm:$0xff]
    %v338 = vld [vmem:[#allocation2 + $0x38] sm:$0xff]
    %v339 = vld [vmem:[#allocation2 + $0x40] sm:$0xff]
    %v340 = vld [vmem:[#allocation2 + $0x48] sm:$0xff]
    %v341 = vld [vmem:[#allocation2 + $0x50] sm:$0xff]
    %v342 = vld [vmem:[#allocation2 + $0x58] sm:$0xff]
    %v343 = vld [vmem:[#allocation2 + $0x60] sm:$0xff]
    %v344 = vld [vmem:[#allocation2 + $0x68] sm:$0xff]
    %v345 = vld [vmem:[#allocation2 + $0x70] sm:$0xff]
    %v346 = vld [vmem:[#allocation2 + $0x78] sm:$0xff]
    %v347 = vld [vmem:[#allocation2 + $0x80] sm:$0xff]
    %v348 = vld [vmem:[#allocation2 + $0x88] sm:$0xff]
    %v349 = vld [vmem:[#allocation2 + $0x90] sm:$0xff]
    %v350 = vld [vmem:[#allocation2 + $0x98] sm:$0xff]
    %v351 = vld [vmem:[#allocation2 + $0xa0] sm:$0xff]
    %v352 = vld [vmem:[#allocation2 + $0xa8] sm:$0xff]
    %v353 = vld [vmem:[#allocation2 + $0xb0] sm:$0xff]
    %v354 = vld [vmem:[#allocation2 + $0xb8] sm:$0xff]
    %v355 = vld [vmem:[#allocation2 + $0xc0] sm:$0xff]
    %v356 = vld [vmem:[#allocation2 + $0xc8] sm:$0xff]
    %v357 = vld [vmem:[#allocation2 + $0xd0] sm:$0xff]
    %v358 = vld [vmem:[#allocation2 + $0xd8] sm:$0xff]
    %v359 = vld [vmem:[#allocation2 + $0xe0] sm:$0xff]
    %v360 = vld [vmem:[#allocation2 + $0xe8] sm:$0xff]
    %v361 = vld [vmem:[#allocation2 + $0xf0] sm:$0xff]
    %v362 = vld [vmem:[#allocation2 + $0xf8] sm:$0xff]
    %v363 = vld [vmem:[#allocation2 + $0x100] sm:$0xff]
    %v364 = vld [vmem:[#allocation2 + $0x108] sm:$0xff]
    %v365 = vld [vmem:[#allocation2 + $0x110] sm:$0xff]
    %v366 = vld [vmem:[#allocation2 + $0x118] sm:$0xff]
    %v367 = vld [vmem:[#allocation2 + $0x120] sm:$0xff]
    %v368 = vld [vmem:[#allocation2 + $0x128] sm:$0xff]
    %v369 = vld [vmem:[#allocation2 + $0x130] sm:$0xff]
    %v370 = vld [vmem:[#allocation2 + $0x138] sm:$0xff]
    %v371 = vld [vmem:[#allocation2 + $0x140] sm:$0xff]
    %v372 = vld [vmem:[#allocation2 + $0x148] sm:$0xff]
    %v373 = vld [vmem:[#allocation2 + $0x150] sm:$0xff]
    %v374 = vld [vmem:[#allocation2 + $0x158] sm:$0xff]
    %v375 = vld [vmem:[%s2] sm:$0xff]
    %v376 = vld [vmem:[%s2 + $0x8] sm:$0xf]
    %378 = vset.pattern.permute.xlu0 0
    %379 = vperm.xlu0 %378, %v375
    %v380 = vpop.permute.xlu0 %379
    %383 = vset.pattern.permute.xlu0 0
    %384 = vperm.xlu0 %383, %v376
    %v385 = vpop.permute.xlu0 %384
    %vm387 = vcmask 785408
    %v389 = vsel %vm387, %v327, 0
    %v392 = vsel %vm387, %v330, 0
    %394 = vmatprep.subr.mxu0 0.0
    %v395 = vand.u32 %v346, 4294901760
    %396 = vmatpush1.msra.mxu0 %v395
    %397 = vmatprep.subr.mxu0 0.0
    %v398 = vand.u32 %v345, 4294901760
    %399 = vmatpush1.msra.mxu0 %v398
    %400 = vmatprep.subr.mxu0 0.0
    %v401 = vand.u32 %v344, 4294901760
    %402 = vmatpush1.msra.mxu0 %v401
    %403 = vmatprep.subr.mxu0 0.0
    %v404 = vand.u32 %v343, 4294901760
    %405 = vmatpush1.msra.mxu0 %v404
    %406 = vmatprep.subr.mxu0 0.0
    %v407 = vand.u32 %v342, 4294901760
    %408 = vmatpush1.msra.mxu0 %v407
    %409 = vmatprep.subr.mxu0 0.0
    %v410 = vand.u32 %v341, 4294901760
    %411 = vmatpush1.msra.mxu0 %v410
    %412 = vmatprep.subr.mxu0 0.0
    %v413 = vand.u32 %v340, 4294901760
    %414 = vmatpush1.msra.mxu0 %v413
    %415 = vmatprep.subr.mxu0 0.0
    %v416 = vand.u32 %v339, 4294901760
    %417 = vmatpush1.msra.mxu0 %v416
    %418 = vmatprep.subr.mxu0 0.0
    %v419 = vand.u32 %v338, 4294901760
    %420 = vmatpush1.msra.mxu0 %v419
    %421 = vmatprep.subr.mxu0 0.0
    %v422 = vand.u32 %v337, 4294901760
    %423 = vmatpush1.msra.mxu0 %v422
    %424 = vmatprep.subr.mxu0 0.0
    %v425 = vand.u32 %v336, 4294901760
    %426 = vmatpush1.msra.mxu0 %v425
    %427 = vmatprep.subr.mxu0 0.0
    %v428 = vand.u32 %v335, 4294901760
    %429 = vmatpush1.msra.mxu0 %v428
    %430 = vmatprep.subr.mxu0 0.0
    %v431 = vand.u32 %v334, 4294901760
    %432 = vmatpush1.msra.mxu0 %v431
    %433 = vmatprep.subr.mxu0 0.0
    %v434 = vand.u32 %v333, 4294901760
    %435 = vmatpush1.msra.mxu0 %v434
    %436 = vmatprep.subr.mxu0 0.0
    %v437 = vand.u32 %v332, 4294901760
    %438 = vmatpush1.msra.mxu0 %v437
    %439 = vmatprep.subr.mxu0 0.0
    %v440 = vand.u32 %v331, 4294901760
    %441 = vmatpush1.msra.mxu0 %v440
    %442 = vmatprep.subr.mxu0 0.0
    %v443 = vand.u32 %v362, 4294901760
    %444 = vmatpush2.msra.mxu0 %v443
    %445 = vmatprep.subr.mxu0 0.0
    %v446 = vand.u32 %v361, 4294901760
    %447 = vmatpush2.msra.mxu0 %v446
    %448 = vmatprep.subr.mxu0 0.0
    %v449 = vand.u32 %v360, 4294901760
    %450 = vmatpush2.msra.mxu0 %v449
    %451 = vmatprep.subr.mxu0 0.0
    %v452 = vand.u32 %v359, 4294901760
    %453 = vmatpush2.msra.mxu0 %v452
    %454 = vmatprep.subr.mxu0 0.0
    %v455 = vand.u32 %v358, 4294901760
    %456 = vmatpush2.msra.mxu0 %v455
    %457 = vmatprep.subr.mxu0 0.0
    %v458 = vand.u32 %v357, 4294901760
    %459 = vmatpush2.msra.mxu0 %v458
    %460 = vmatprep.subr.mxu0 0.0
    %v461 = vand.u32 %v356, 4294901760
    %462 = vmatpush2.msra.mxu0 %v461
    %463 = vmatprep.subr.mxu0 0.0
    %v464 = vand.u32 %v355, 4294901760
    %465 = vmatpush2.msra.mxu0 %v464
    %466 = vmatprep.subr.mxu0 0.0
    %v467 = vand.u32 %v354, 4294901760
    %468 = vmatpush2.msra.mxu0 %v467
    %469 = vmatprep.subr.mxu0 0.0
    %v470 = vand.u32 %v353, 4294901760
    %471 = vmatpush2.msra.mxu0 %v470
    %472 = vmatprep.subr.mxu0 0.0
    %v473 = vand.u32 %v352, 4294901760
    %474 = vmatpush2.msra.mxu0 %v473
    %475 = vmatprep.subr.mxu0 0.0
    %v476 = vand.u32 %v351, 4294901760
    %477 = vmatpush2.msra.mxu0 %v476
    %478 = vmatprep.subr.mxu0 0.0
    %v479 = vand.u32 %v350, 4294901760
    %480 = vmatpush2.msra.mxu0 %v479
    %481 = vmatprep.subr.mxu0 0.0
    %v482 = vand.u32 %v349, 4294901760
    %483 = vmatpush2.msra.mxu0 %v482
    %484 = vmatprep.subr.mxu0 0.0
    %v485 = vand.u32 %v348, 4294901760
    %486 = vmatpush2.msra.mxu0 %v485
    %487 = vmatprep.subr.mxu0 0.0
    %v488 = vand.u32 %v347, 4294901760
    %489 = vmatpush2.msra.mxu0 %v488
    %v490 = vand.u32 %v326, 4294901760
    %v491 = vsub.f32 %v326, %v490
    %v492 = vand.u32 %v491, 4294901760
    %v493 = vsub.f32 %v491, %v492
    %v494 = vand.u32 %v493, 4294901760
    %495 = vmatprep.mubr.f32.mxu0 %v494
    %v496 = vand.u32 %v325, 4294901760
    %v497 = vsub.f32 %v325, %v496
    %v498 = vand.u32 %v497, 4294901760
    %v499 = vsub.f32 %v497, %v498
    %v500 = vand.u32 %v499, 4294901760
    %501 = vmatmul.mubr.f32.gmra.mxu0 %v500
    %v502 = vpop.f32.mrf.mxu0
    %v503 = vadd.f32 %v380, %v502
    %v504 = vpop.f32.mrf.mxu0
    %v505 = vand.u32 %v329, 4294901760
    %v506 = vsub.f32 %v329, %v505
    %v507 = vand.u32 %v506, 4294901760
    %v508 = vsub.f32 %v506, %v507
    %v509 = vand.u32 %v508, 4294901760
    %510 = vmatprep.mubr.f32.mxu0 %v509
    %v511 = vand.u32 %v328, 4294901760
    %v512 = vsub.f32 %v328, %v511
    %v513 = vand.u32 %v512, 4294901760
    %v514 = vsub.f32 %v512, %v513
    %v515 = vand.u32 %v514, 4294901760
    %516 = vmatmul.mubr.f32.gmra.mxu0 %v515
    %v517 = vpop.f32.mrf.mxu0
    %v518 = vadd.f32 %v385, %v517
    %v519 = vpop.f32.mrf.mxu0
    %520 = vdwg.mxu0
    %521 = vmatprep.subr.mxu0 0.0
    %v522 = vand.u32 %v346, 4294901760
    %v523 = vsub.f32 %v346, %v522
    %v524 = vand.u32 %v523, 4294901760
    %v525 = vsub.f32 %v523, %v524
    %v526 = vand.u32 %v525, 4294901760
    %527 = vmatpush1.msra.mxu0 %v526
    %528 = vmatprep.subr.mxu0 0.0
    %v529 = vand.u32 %v345, 4294901760
    %v530 = vsub.f32 %v345, %v529
    %v531 = vand.u32 %v530, 4294901760
    %v532 = vsub.f32 %v530, %v531
    %v533 = vand.u32 %v532, 4294901760
    %534 = vmatpush1.msra.mxu0 %v533
    %535 = vmatprep.subr.mxu0 0.0
    %v536 = vand.u32 %v344, 4294901760
    %v537 = vsub.f32 %v344, %v536
    %v538 = vand.u32 %v537, 4294901760
    %v539 = vsub.f32 %v537, %v538
    %v540 = vand.u32 %v539, 4294901760
    %541 = vmatpush1.msra.mxu0 %v540
    %542 = vmatprep.subr.mxu0 0.0
    %v543 = vand.u32 %v343, 4294901760
    %v544 = vsub.f32 %v343, %v543
    %v545 = vand.u32 %v544, 4294901760
    %v546 = vsub.f32 %v544, %v545
    %v547 = vand.u32 %v546, 4294901760
    %548 = vmatpush1.msra.mxu0 %v547
    %549 = vmatprep.subr.mxu0 0.0
    %v550 = vand.u32 %v342, 4294901760
    %v551 = vsub.f32 %v342, %v550
    %v552 = vand.u32 %v551, 4294901760
    %v553 = vsub.f32 %v551, %v552
    %v554 = vand.u32 %v553, 4294901760
    %555 = vmatpush1.msra.mxu0 %v554
    %556 = vmatprep.subr.mxu0 0.0
    %v557 = vand.u32 %v341, 4294901760
    %v558 = vsub.f32 %v341, %v557
    %v559 = vand.u32 %v558, 4294901760
    %v560 = vsub.f32 %v558, %v559
    %v561 = vand.u32 %v560, 4294901760
    %562 = vmatpush1.msra.mxu0 %v561
    %563 = vmatprep.subr.mxu0 0.0
    %v564 = vand.u32 %v340, 4294901760
    %v565 = vsub.f32 %v340, %v564
    %v566 = vand.u32 %v565, 4294901760
    %v567 = vsub.f32 %v565, %v566
    %v568 = vand.u32 %v567, 4294901760
    %569 = vmatpush1.msra.mxu0 %v568
    %570 = vmatprep.subr.mxu0 0.0
    %v571 = vand.u32 %v339, 4294901760
    %v572 = vsub.f32 %v339, %v571
    %v573 = vand.u32 %v572, 4294901760
    %v574 = vsub.f32 %v572, %v573
    %v575 = vand.u32 %v574, 4294901760
    %576 = vmatpush1.msra.mxu0 %v575
    %577 = vmatprep.subr.mxu0 0.0
    %v578 = vand.u32 %v338, 4294901760
    %v579 = vsub.f32 %v338, %v578
    %v580 = vand.u32 %v579, 4294901760
    %v581 = vsub.f32 %v579, %v580
    %v582 = vand.u32 %v581, 4294901760
    %583 = vmatpush1.msra.mxu0 %v582
    %584 = vmatprep.subr.mxu0 0.0
    %v585 = vand.u32 %v337, 4294901760
    %v586 = vsub.f32 %v337, %v585
    %v587 = vand.u32 %v586, 4294901760
    %v588 = vsub.f32 %v586, %v587
    %v589 = vand.u32 %v588, 4294901760
    %590 = vmatpush1.msra.mxu0 %v589
    %591 = vmatprep.subr.mxu0 0.0
    %v592 = vand.u32 %v336, 4294901760
    %v593 = vsub.f32 %v336, %v592
    %v594 = vand.u32 %v593, 4294901760
    %v595 = vsub.f32 %v593, %v594
    %v596 = vand.u32 %v595, 4294901760
    %597 = vmatpush1.msra.mxu0 %v596
    %598 = vmatprep.subr.mxu0 0.0
    %v599 = vand.u32 %v335, 4294901760
    %v600 = vsub.f32 %v335, %v599
    %v601 = vand.u32 %v600, 4294901760
    %v602 = vsub.f32 %v600, %v601
    %v603 = vand.u32 %v602, 4294901760
    %604 = vmatpush1.msra.mxu0 %v603
    %605 = vmatprep.subr.mxu0 0.0
    %v606 = vand.u32 %v334, 4294901760
    %v607 = vsub.f32 %v334, %v606
    %v608 = vand.u32 %v607, 4294901760
    %v609 = vsub.f32 %v607, %v608
    %v610 = vand.u32 %v609, 4294901760
    %611 = vmatpush1.msra.mxu0 %v610
    %612 = vmatprep.subr.mxu0 0.0
    %v613 = vand.u32 %v333, 4294901760
    %v614 = vsub.f32 %v333, %v613
    %v615 = vand.u32 %v614, 4294901760
    %v616 = vsub.f32 %v614, %v615
    %v617 = vand.u32 %v616, 4294901760
    %618 = vmatpush1.msra.mxu0 %v617
    %619 = vmatprep.subr.mxu0 0.0
    %v620 = vand.u32 %v332, 4294901760
    %v621 = vsub.f32 %v332, %v620
    %v622 = vand.u32 %v621, 4294901760
    %v623 = vsub.f32 %v621, %v622
    %v624 = vand.u32 %v623, 4294901760
    %625 = vmatpush1.msra.mxu0 %v624
    %626 = vmatprep.subr.mxu0 0.0
    %v627 = vand.u32 %v331, 4294901760
    %v628 = vsub.f32 %v331, %v627
    %v629 = vand.u32 %v628, 4294901760
    %v630 = vsub.f32 %v628, %v629
    %v631 = vand.u32 %v630, 4294901760
    %632 = vmatpush1.msra.mxu0 %v631
    %633 = vmatprep.subr.mxu0 0.0
    %v634 = vand.u32 %v362, 4294901760
    %v635 = vsub.f32 %v362, %v634
    %v636 = vand.u32 %v635, 4294901760
    %v637 = vsub.f32 %v635, %v636
    %v638 = vand.u32 %v637, 4294901760
    %639 = vmatpush2.msra.mxu0 %v638
    %640 = vmatprep.subr.mxu0 0.0
    %v641 = vand.u32 %v361, 4294901760
    %v642 = vsub.f32 %v361, %v641
    %v643 = vand.u32 %v642, 4294901760
    %v644 = vsub.f32 %v642, %v643
    %v645 = vand.u32 %v644, 4294901760
    %646 = vmatpush2.msra.mxu0 %v645
    %647 = vmatprep.subr.mxu0 0.0
    %v648 = vand.u32 %v360, 4294901760
    %v649 = vsub.f32 %v360, %v648
    %v650 = vand.u32 %v649, 4294901760
    %v651 = vsub.f32 %v649, %v650
    %v652 = vand.u32 %v651, 4294901760
    %653 = vmatpush2.msra.mxu0 %v652
    %654 = vmatprep.subr.mxu0 0.0
    %v655 = vand.u32 %v359, 4294901760
    %v656 = vsub.f32 %v359, %v655
    %v657 = vand.u32 %v656, 4294901760
    %v658 = vsub.f32 %v656, %v657
    %v659 = vand.u32 %v658, 4294901760
    %660 = vmatpush2.msra.mxu0 %v659
    %661 = vmatprep.subr.mxu0 0.0
    %v662 = vand.u32 %v358, 4294901760
    %v663 = vsub.f32 %v358, %v662
    %v664 = vand.u32 %v663, 4294901760
    %v665 = vsub.f32 %v663, %v664
    %v666 = vand.u32 %v665, 4294901760
    %667 = vmatpush2.msra.mxu0 %v666
    %668 = vmatprep.subr.mxu0 0.0
    %v669 = vand.u32 %v357, 4294901760
    %v670 = vsub.f32 %v357, %v669
    %v671 = vand.u32 %v670, 4294901760
    %v672 = vsub.f32 %v670, %v671
    %v673 = vand.u32 %v672, 4294901760
    %674 = vmatpush2.msra.mxu0 %v673
    %675 = vmatprep.subr.mxu0 0.0
    %v676 = vand.u32 %v356, 4294901760
    %v677 = vsub.f32 %v356, %v676
    %v678 = vand.u32 %v677, 4294901760
    %v679 = vsub.f32 %v677, %v678
    %v680 = vand.u32 %v679, 4294901760
    %681 = vmatpush2.msra.mxu0 %v680
    %682 = vmatprep.subr.mxu0 0.0
    %v683 = vand.u32 %v355, 4294901760
    %v684 = vsub.f32 %v355, %v683
    %v685 = vand.u32 %v684, 4294901760
    %v686 = vsub.f32 %v684, %v685
    %v687 = vand.u32 %v686, 4294901760
    %688 = vmatpush2.msra.mxu0 %v687
    %689 = vmatprep.subr.mxu0 0.0
    %v690 = vand.u32 %v354, 4294901760
    %v691 = vsub.f32 %v354, %v690
    %v692 = vand.u32 %v691, 4294901760
    %v693 = vsub.f32 %v691, %v692
    %v694 = vand.u32 %v693, 4294901760
    %695 = vmatpush2.msra.mxu0 %v694
    %696 = vmatprep.subr.mxu0 0.0
    %v697 = vand.u32 %v353, 4294901760
    %v698 = vsub.f32 %v353, %v697
    %v699 = vand.u32 %v698, 4294901760
    %v700 = vsub.f32 %v698, %v699
    %v701 = vand.u32 %v700, 4294901760
    %702 = vmatpush2.msra.mxu0 %v701
    %703 = vmatprep.subr.mxu0 0.0
    %v704 = vand.u32 %v352, 4294901760
    %v705 = vsub.f32 %v352, %v704
    %v706 = vand.u32 %v705, 4294901760
    %v707 = vsub.f32 %v705, %v706
    %v708 = vand.u32 %v707, 4294901760
    %709 = vmatpush2.msra.mxu0 %v708
    %710 = vmatprep.subr.mxu0 0.0
    %v711 = vand.u32 %v351, 4294901760
    %v712 = vsub.f32 %v351, %v711
    %v713 = vand.u32 %v712, 4294901760
    %v714 = vsub.f32 %v712, %v713
    %v715 = vand.u32 %v714, 4294901760
    %716 = vmatpush2.msra.mxu0 %v715
    %717 = vmatprep.subr.mxu0 0.0
    %v718 = vand.u32 %v350, 4294901760
    %v719 = vsub.f32 %v350, %v718
    %v720 = vand.u32 %v719, 4294901760
    %v721 = vsub.f32 %v719, %v720
    %v722 = vand.u32 %v721, 4294901760
    %723 = vmatpush2.msra.mxu0 %v722
    %724 = vmatprep.subr.mxu0 0.0
    %v725 = vand.u32 %v349, 4294901760
    %v726 = vsub.f32 %v349, %v725
    %v727 = vand.u32 %v726, 4294901760
    %v728 = vsub.f32 %v726, %v727
    %v729 = vand.u32 %v728, 4294901760
    %730 = vmatpush2.msra.mxu0 %v729
    %731 = vmatprep.subr.mxu0 0.0
    %v732 = vand.u32 %v348, 4294901760
    %v733 = vsub.f32 %v348, %v732
    %v734 = vand.u32 %v733, 4294901760
    %v735 = vsub.f32 %v733, %v734
    %v736 = vand.u32 %v735, 4294901760
    %737 = vmatpush2.msra.mxu0 %v736
    %738 = vmatprep.subr.mxu0 0.0
    %v739 = vand.u32 %v347, 4294901760
    %v740 = vsub.f32 %v347, %v739
    %v741 = vand.u32 %v740, 4294901760
    %v742 = vsub.f32 %v740, %v741
    %v743 = vand.u32 %v742, 4294901760
    %744 = vmatpush2.msra.mxu0 %v743
    %v745 = vand.u32 %v326, 4294901760
    %746 = vmatprep.mubr.f32.mxu0 %v745
    %v747 = vand.u32 %v325, 4294901760
    %748 = vmatmul.mubr.f32.gmra.mxu0 %v747
    %v749 = vpop.f32.mrf.mxu0
    %v750 = vadd.f32 %v503, %v749
    %v751 = vpop.f32.mrf.mxu0
    %v752 = vand.u32 %v329, 4294901760
    %753 = vmatprep.mubr.f32.mxu0 %v752
    %v754 = vand.u32 %v328, 4294901760
    %755 = vmatmul.mubr.f32.gmra.mxu0 %v754
    %v756 = vpop.f32.mrf.mxu0
    %v757 = vadd.f32 %v518, %v756
    %v758 = vpop.f32.mrf.mxu0
    %759 = vdwg.mxu0
    %760 = vmatprep.subr.mxu0 0.0
    %v761 = vand.u32 %v346, 4294901760
    %v762 = vsub.f32 %v346, %v761
    %763 = vmatpush1.msra.mxu0 %v762
    %764 = vmatprep.subr.mxu0 0.0
    %v765 = vand.u32 %v345, 4294901760
    %v766 = vsub.f32 %v345, %v765
    %767 = vmatpush1.msra.mxu0 %v766
    %768 = vmatprep.subr.mxu0 0.0
    %v769 = vand.u32 %v344, 4294901760
    %v770 = vsub.f32 %v344, %v769
    %771 = vmatpush1.msra.mxu0 %v770
    %772 = vmatprep.subr.mxu0 0.0
    %v773 = vand.u32 %v343, 4294901760
    %v774 = vsub.f32 %v343, %v773
    %775 = vmatpush1.msra.mxu0 %v774
    %776 = vmatprep.subr.mxu0 0.0
    %v777 = vand.u32 %v342, 4294901760
    %v778 = vsub.f32 %v342, %v777
    %779 = vmatpush1.msra.mxu0 %v778
    %780 = vmatprep.subr.mxu0 0.0
    %v781 = vand.u32 %v341, 4294901760
    %v782 = vsub.f32 %v341, %v781
    %783 = vmatpush1.msra.mxu0 %v782
    %784 = vmatprep.subr.mxu0 0.0
    %v785 = vand.u32 %v340, 4294901760
    %v786 = vsub.f32 %v340, %v785
    %787 = vmatpush1.msra.mxu0 %v786
    %788 = vmatprep.subr.mxu0 0.0
    %v789 = vand.u32 %v339, 4294901760
    %v790 = vsub.f32 %v339, %v789
    %791 = vmatpush1.msra.mxu0 %v790
    %792 = vmatprep.subr.mxu0 0.0
    %v793 = vand.u32 %v338, 4294901760
    %v794 = vsub.f32 %v338, %v793
    %795 = vmatpush1.msra.mxu0 %v794
    %796 = vmatprep.subr.mxu0 0.0
    %v797 = vand.u32 %v337, 4294901760
    %v798 = vsub.f32 %v337, %v797
    %799 = vmatpush1.msra.mxu0 %v798
    %800 = vmatprep.subr.mxu0 0.0
    %v801 = vand.u32 %v336, 4294901760
    %v802 = vsub.f32 %v336, %v801
    %803 = vmatpush1.msra.mxu0 %v802
    %804 = vmatprep.subr.mxu0 0.0
    %v805 = vand.u32 %v335, 4294901760
    %v806 = vsub.f32 %v335, %v805
    %807 = vmatpush1.msra.mxu0 %v806
    %808 = vmatprep.subr.mxu0 0.0
    %v809 = vand.u32 %v334, 4294901760
    %v810 = vsub.f32 %v334, %v809
    %811 = vmatpush1.msra.mxu0 %v810
    %812 = vmatprep.subr.mxu0 0.0
    %v813 = vand.u32 %v333, 4294901760
    %v814 = vsub.f32 %v333, %v813
    %815 = vmatpush1.msra.mxu0 %v814
    %816 = vmatprep.subr.mxu0 0.0
    %v817 = vand.u32 %v332, 4294901760
    %v818 = vsub.f32 %v332, %v817
    %819 = vmatpush1.msra.mxu0 %v818
    %820 = vmatprep.subr.mxu0 0.0
    %v821 = vand.u32 %v331, 4294901760
    %v822 = vsub.f32 %v331, %v821
    %823 = vmatpush1.msra.mxu0 %v822
    %824 = vmatprep.subr.mxu0 0.0
    %v825 = vand.u32 %v362, 4294901760
    %v826 = vsub.f32 %v362, %v825
    %827 = vmatpush2.msra.mxu0 %v826
    %828 = vmatprep.subr.mxu0 0.0
    %v829 = vand.u32 %v361, 4294901760
    %v830 = vsub.f32 %v361, %v829
    %831 = vmatpush2.msra.mxu0 %v830
    %832 = vmatprep.subr.mxu0 0.0
    %v833 = vand.u32 %v360, 4294901760
    %v834 = vsub.f32 %v360, %v833
    %835 = vmatpush2.msra.mxu0 %v834
    %836 = vmatprep.subr.mxu0 0.0
    %v837 = vand.u32 %v359, 4294901760
    %v838 = vsub.f32 %v359, %v837
    %839 = vmatpush2.msra.mxu0 %v838
    %840 = vmatprep.subr.mxu0 0.0
    %v841 = vand.u32 %v358, 4294901760
    %v842 = vsub.f32 %v358, %v841
    %843 = vmatpush2.msra.mxu0 %v842
    %844 = vmatprep.subr.mxu0 0.0
    %v845 = vand.u32 %v357, 4294901760
    %v846 = vsub.f32 %v357, %v845
    %847 = vmatpush2.msra.mxu0 %v846
    %848 = vmatprep.subr.mxu0 0.0
    %v849 = vand.u32 %v356, 4294901760
    %v850 = vsub.f32 %v356, %v849
    %851 = vmatpush2.msra.mxu0 %v850
    %852 = vmatprep.subr.mxu0 0.0
    %v853 = vand.u32 %v355, 4294901760
    %v854 = vsub.f32 %v355, %v853
    %855 = vmatpush2.msra.mxu0 %v854
    %856 = vmatprep.subr.mxu0 0.0
    %v857 = vand.u32 %v354, 4294901760
    %v858 = vsub.f32 %v354, %v857
    %859 = vmatpush2.msra.mxu0 %v858
    %860 = vmatprep.subr.mxu0 0.0
    %v861 = vand.u32 %v353, 4294901760
    %v862 = vsub.f32 %v353, %v861
    %863 = vmatpush2.msra.mxu0 %v862
    %864 = vmatprep.subr.mxu0 0.0
    %v865 = vand.u32 %v352, 4294901760
    %v866 = vsub.f32 %v352, %v865
    %867 = vmatpush2.msra.mxu0 %v866
    %868 = vmatprep.subr.mxu0 0.0
    %v869 = vand.u32 %v351, 4294901760
    %v870 = vsub.f32 %v351, %v869
    %871 = vmatpush2.msra.mxu0 %v870
    %872 = vmatprep.subr.mxu0 0.0
    %v873 = vand.u32 %v350, 4294901760
    %v874 = vsub.f32 %v350, %v873
    %875 = vmatpush2.msra.mxu0 %v874
    %876 = vmatprep.subr.mxu0 0.0
    %v877 = vand.u32 %v349, 4294901760
    %v878 = vsub.f32 %v349, %v877
    %879 = vmatpush2.msra.mxu0 %v878
    %880 = vmatprep.subr.mxu0 0.0
    %v881 = vand.u32 %v348, 4294901760
    %v882 = vsub.f32 %v348, %v881
    %883 = vmatpush2.msra.mxu0 %v882
    %884 = vmatprep.subr.mxu0 0.0
    %v885 = vand.u32 %v347, 4294901760
    %v886 = vsub.f32 %v347, %v885
    %887 = vmatpush2.msra.mxu0 %v886
    %v888 = vand.u32 %v326, 4294901760
    %v889 = vsub.f32 %v326, %v888
    %890 = vmatprep.mubr.f32.mxu0 %v889
    %v891 = vand.u32 %v325, 4294901760
    %v892 = vsub.f32 %v325, %v891
    %893 = vmatmul.mubr.f32.gmra.mxu0 %v892
    %v894 = vpop.f32.mrf.mxu0
    %v895 = vadd.f32 %v750, %v894
    %v896 = vpop.f32.mrf.mxu0
    %v897 = vand.u32 %v329, 4294901760
    %v898 = vsub.f32 %v329, %v897
    %899 = vmatprep.mubr.f32.mxu0 %v898
    %v900 = vand.u32 %v328, 4294901760
    %v901 = vsub.f32 %v328, %v900
    %902 = vmatmul.mubr.f32.gmra.mxu0 %v901
    %v903 = vpop.f32.mrf.mxu0
    %v904 = vadd.f32 %v757, %v903
    %v905 = vpop.f32.mrf.mxu0
    %906 = vdwg.mxu0
    %907 = vmatprep.subr.mxu0 0.0
    %v908 = vand.u32 %v346, 4294901760
    %909 = vmatpush1.msra.mxu0 %v908
    %910 = vmatprep.subr.mxu0 0.0
    %v911 = vand.u32 %v345, 4294901760
    %912 = vmatpush1.msra.mxu0 %v911
    %913 = vmatprep.subr.mxu0 0.0
    %v914 = vand.u32 %v344, 4294901760
    %915 = vmatpush1.msra.mxu0 %v914
    %916 = vmatprep.subr.mxu0 0.0
    %v917 = vand.u32 %v343, 4294901760
    %918 = vmatpush1.msra.mxu0 %v917
    %919 = vmatprep.subr.mxu0 0.0
    %v920 = vand.u32 %v342, 4294901760
    %921 = vmatpush1.msra.mxu0 %v920
    %922 = vmatprep.subr.mxu0 0.0
    %v923 = vand.u32 %v341, 4294901760
    %924 = vmatpush1.msra.mxu0 %v923
    %925 = vmatprep.subr.mxu0 0.0
    %v926 = vand.u32 %v340, 4294901760
    %927 = vmatpush1.msra.mxu0 %v926
    %928 = vmatprep.subr.mxu0 0.0
    %v929 = vand.u32 %v339, 4294901760
    %930 = vmatpush1.msra.mxu0 %v929
    %931 = vmatprep.subr.mxu0 0.0
    %v932 = vand.u32 %v338, 4294901760
    %933 = vmatpush1.msra.mxu0 %v932
    %934 = vmatprep.subr.mxu0 0.0
    %v935 = vand.u32 %v337, 4294901760
    %936 = vmatpush1.msra.mxu0 %v935
    %937 = vmatprep.subr.mxu0 0.0
    %v938 = vand.u32 %v336, 4294901760
    %939 = vmatpush1.msra.mxu0 %v938
    %940 = vmatprep.subr.mxu0 0.0
    %v941 = vand.u32 %v335, 4294901760
    %942 = vmatpush1.msra.mxu0 %v941
    %943 = vmatprep.subr.mxu0 0.0
    %v944 = vand.u32 %v334, 4294901760
    %945 = vmatpush1.msra.mxu0 %v944
    %946 = vmatprep.subr.mxu0 0.0
    %v947 = vand.u32 %v333, 4294901760
    %948 = vmatpush1.msra.mxu0 %v947
    %949 = vmatprep.subr.mxu0 0.0
    %v950 = vand.u32 %v332, 4294901760
    %951 = vmatpush1.msra.mxu0 %v950
    %952 = vmatprep.subr.mxu0 0.0
    %v953 = vand.u32 %v331, 4294901760
    %954 = vmatpush1.msra.mxu0 %v953
    %955 = vmatprep.subr.mxu0 0.0
    %v956 = vand.u32 %v362, 4294901760
    %957 = vmatpush2.msra.mxu0 %v956
    %958 = vmatprep.subr.mxu0 0.0
    %v959 = vand.u32 %v361, 4294901760
    %960 = vmatpush2.msra.mxu0 %v959
    %961 = vmatprep.subr.mxu0 0.0
    %v962 = vand.u32 %v360, 4294901760
    %963 = vmatpush2.msra.mxu0 %v962
    %964 = vmatprep.subr.mxu0 0.0
    %v965 = vand.u32 %v359, 4294901760
    %966 = vmatpush2.msra.mxu0 %v965
    %967 = vmatprep.subr.mxu0 0.0
    %v968 = vand.u32 %v358, 4294901760
    %969 = vmatpush2.msra.mxu0 %v968
    %970 = vmatprep.subr.mxu0 0.0
    %v971 = vand.u32 %v357, 4294901760
    %972 = vmatpush2.msra.mxu0 %v971
    %973 = vmatprep.subr.mxu0 0.0
    %v974 = vand.u32 %v356, 4294901760
    %975 = vmatpush2.msra.mxu0 %v974
    %976 = vmatprep.subr.mxu0 0.0
    %v977 = vand.u32 %v355, 4294901760
    %978 = vmatpush2.msra.mxu0 %v977
    %979 = vmatprep.subr.mxu0 0.0
    %v980 = vand.u32 %v354, 4294901760
    %981 = vmatpush2.msra.mxu0 %v980
    %982 = vmatprep.subr.mxu0 0.0
    %v983 = vand.u32 %v353, 4294901760
    %984 = vmatpush2.msra.mxu0 %v983
    %985 = vmatprep.subr.mxu0 0.0
    %v986 = vand.u32 %v352, 4294901760
    %987 = vmatpush2.msra.mxu0 %v986
    %988 = vmatprep.subr.mxu0 0.0
    %v989 = vand.u32 %v351, 4294901760
    %990 = vmatpush2.msra.mxu0 %v989
    %991 = vmatprep.subr.mxu0 0.0
    %v992 = vand.u32 %v350, 4294901760
    %993 = vmatpush2.msra.mxu0 %v992
    %994 = vmatprep.subr.mxu0 0.0
    %v995 = vand.u32 %v349, 4294901760
    %996 = vmatpush2.msra.mxu0 %v995
    %997 = vmatprep.subr.mxu0 0.0
    %v998 = vand.u32 %v348, 4294901760
    %999 = vmatpush2.msra.mxu0 %v998
    %1000 = vmatprep.subr.mxu0 0.0
    %v1001 = vand.u32 %v347, 4294901760
    %1002 = vmatpush2.msra.mxu0 %v1001
    %v1003 = vand.u32 %v326, 4294901760
    %v1004 = vsub.f32 %v326, %v1003
    %v1005 = vand.u32 %v1004, 4294901760
    %1006 = vmatprep.mubr.f32.mxu0 %v1005
    %v1007 = vand.u32 %v325, 4294901760
    %v1008 = vsub.f32 %v325, %v1007
    %v1009 = vand.u32 %v1008, 4294901760
    %1010 = vmatmul.mubr.f32.gmra.mxu0 %v1009
    %v1011 = vpop.f32.mrf.mxu0
    %v1012 = vadd.f32 %v895, %v1011
    %v1013 = vpop.f32.mrf.mxu0
    %v1014 = vand.u32 %v329, 4294901760
    %v1015 = vsub.f32 %v329, %v1014
    %v1016 = vand.u32 %v1015, 4294901760
    %1017 = vmatprep.mubr.f32.mxu0 %v1016
    %v1018 = vand.u32 %v328, 4294901760
    %v1019 = vsub.f32 %v328, %v1018
    %v1020 = vand.u32 %v1019, 4294901760
    %1021 = vmatmul.mubr.f32.gmra.mxu0 %v1020
    %v1022 = vpop.f32.mrf.mxu0
    %v1023 = vadd.f32 %v904, %v1022
    %v1024 = vpop.f32.mrf.mxu0
    %1025 = vdwg.mxu0
    %1026 = vmatprep.subr.mxu0 0.0
    %v1027 = vand.u32 %v346, 4294901760
    %v1028 = vsub.f32 %v346, %v1027
    %v1029 = vand.u32 %v1028, 4294901760
    %1030 = vmatpush1.msra.mxu0 %v1029
    %1031 = vmatprep.subr.mxu0 0.0
    %v1032 = vand.u32 %v345, 4294901760
    %v1033 = vsub.f32 %v345, %v1032
    %v1034 = vand.u32 %v1033, 4294901760
    %1035 = vmatpush1.msra.mxu0 %v1034
    %1036 = vmatprep.subr.mxu0 0.0
    %v1037 = vand.u32 %v344, 4294901760
    %v1038 = vsub.f32 %v344, %v1037
    %v1039 = vand.u32 %v1038, 4294901760
    %1040 = vmatpush1.msra.mxu0 %v1039
    %1041 = vmatprep.subr.mxu0 0.0
    %v1042 = vand.u32 %v343, 4294901760
    %v1043 = vsub.f32 %v343, %v1042
    %v1044 = vand.u32 %v1043, 4294901760
    %1045 = vmatpush1.msra.mxu0 %v1044
    %1046 = vmatprep.subr.mxu0 0.0
    %v1047 = vand.u32 %v342, 4294901760
    %v1048 = vsub.f32 %v342, %v1047
    %v1049 = vand.u32 %v1048, 4294901760
    %1050 = vmatpush1.msra.mxu0 %v1049
    %1051 = vmatprep.subr.mxu0 0.0
    %v1052 = vand.u32 %v341, 4294901760
    %v1053 = vsub.f32 %v341, %v1052
    %v1054 = vand.u32 %v1053, 4294901760
    %1055 = vmatpush1.msra.mxu0 %v1054
    %1056 = vmatprep.subr.mxu0 0.0
    %v1057 = vand.u32 %v340, 4294901760
    %v1058 = vsub.f32 %v340, %v1057
    %v1059 = vand.u32 %v1058, 4294901760
    %1060 = vmatpush1.msra.mxu0 %v1059
    %1061 = vmatprep.subr.mxu0 0.0
    %v1062 = vand.u32 %v339, 4294901760
    %v1063 = vsub.f32 %v339, %v1062
    %v1064 = vand.u32 %v1063, 4294901760
    %1065 = vmatpush1.msra.mxu0 %v1064
    %1066 = vmatprep.subr.mxu0 0.0
    %v1067 = vand.u32 %v338, 4294901760
    %v1068 = vsub.f32 %v338, %v1067
    %v1069 = vand.u32 %v1068, 4294901760
    %1070 = vmatpush1.msra.mxu0 %v1069
    %1071 = vmatprep.subr.mxu0 0.0
    %v1072 = vand.u32 %v337, 4294901760
    %v1073 = vsub.f32 %v337, %v1072
    %v1074 = vand.u32 %v1073, 4294901760
    %1075 = vmatpush1.msra.mxu0 %v1074
    %1076 = vmatprep.subr.mxu0 0.0
    %v1077 = vand.u32 %v336, 4294901760
    %v1078 = vsub.f32 %v336, %v1077
    %v1079 = vand.u32 %v1078, 4294901760
    %1080 = vmatpush1.msra.mxu0 %v1079
    %1081 = vmatprep.subr.mxu0 0.0
    %v1082 = vand.u32 %v335, 4294901760
    %v1083 = vsub.f32 %v335, %v1082
    %v1084 = vand.u32 %v1083, 4294901760
    %1085 = vmatpush1.msra.mxu0 %v1084
    %1086 = vmatprep.subr.mxu0 0.0
    %v1087 = vand.u32 %v334, 4294901760
    %v1088 = vsub.f32 %v334, %v1087
    %v1089 = vand.u32 %v1088, 4294901760
    %1090 = vmatpush1.msra.mxu0 %v1089
    %1091 = vmatprep.subr.mxu0 0.0
    %v1092 = vand.u32 %v333, 4294901760
    %v1093 = vsub.f32 %v333, %v1092
    %v1094 = vand.u32 %v1093, 4294901760
    %1095 = vmatpush1.msra.mxu0 %v1094
    %1096 = vmatprep.subr.mxu0 0.0
    %v1097 = vand.u32 %v332, 4294901760
    %v1098 = vsub.f32 %v332, %v1097
    %v1099 = vand.u32 %v1098, 4294901760
    %1100 = vmatpush1.msra.mxu0 %v1099
    %1101 = vmatprep.subr.mxu0 0.0
    %v1102 = vand.u32 %v331, 4294901760
    %v1103 = vsub.f32 %v331, %v1102
    %v1104 = vand.u32 %v1103, 4294901760
    %1105 = vmatpush1.msra.mxu0 %v1104
    %1106 = vmatprep.subr.mxu0 0.0
    %v1107 = vand.u32 %v362, 4294901760
    %v1108 = vsub.f32 %v362, %v1107
    %v1109 = vand.u32 %v1108, 4294901760
    %1110 = vmatpush2.msra.mxu0 %v1109
    %1111 = vmatprep.subr.mxu0 0.0
    %v1112 = vand.u32 %v361, 4294901760
    %v1113 = vsub.f32 %v361, %v1112
    %v1114 = vand.u32 %v1113, 4294901760
    %1115 = vmatpush2.msra.mxu0 %v1114
    %1116 = vmatprep.subr.mxu0 0.0
    %v1117 = vand.u32 %v360, 4294901760
    %v1118 = vsub.f32 %v360, %v1117
    %v1119 = vand.u32 %v1118, 4294901760
    %1120 = vmatpush2.msra.mxu0 %v1119
    %1121 = vmatprep.subr.mxu0 0.0
    %v1122 = vand.u32 %v359, 4294901760
    %v1123 = vsub.f32 %v359, %v1122
    %v1124 = vand.u32 %v1123, 4294901760
    %1125 = vmatpush2.msra.mxu0 %v1124
    %1126 = vmatprep.subr.mxu0 0.0
    %v1127 = vand.u32 %v358, 4294901760
    %v1128 = vsub.f32 %v358, %v1127
    %v1129 = vand.u32 %v1128, 4294901760
    %1130 = vmatpush2.msra.mxu0 %v1129
    %1131 = vmatprep.subr.mxu0 0.0
    %v1132 = vand.u32 %v357, 4294901760
    %v1133 = vsub.f32 %v357, %v1132
    %v1134 = vand.u32 %v1133, 4294901760
    %1135 = vmatpush2.msra.mxu0 %v1134
    %1136 = vmatprep.subr.mxu0 0.0
    %v1137 = vand.u32 %v356, 4294901760
    %v1138 = vsub.f32 %v356, %v1137
    %v1139 = vand.u32 %v1138, 4294901760
    %1140 = vmatpush2.msra.mxu0 %v1139
    %1141 = vmatprep.subr.mxu0 0.0
    %v1142 = vand.u32 %v355, 4294901760
    %v1143 = vsub.f32 %v355, %v1142
    %v1144 = vand.u32 %v1143, 4294901760
    %1145 = vmatpush2.msra.mxu0 %v1144
    %1146 = vmatprep.subr.mxu0 0.0
    %v1147 = vand.u32 %v354, 4294901760
    %v1148 = vsub.f32 %v354, %v1147
    %v1149 = vand.u32 %v1148, 4294901760
    %1150 = vmatpush2.msra.mxu0 %v1149
    %1151 = vmatprep.subr.mxu0 0.0
    %v1152 = vand.u32 %v353, 4294901760
    %v1153 = vsub.f32 %v353, %v1152
    %v1154 = vand.u32 %v1153, 4294901760
    %1155 = vmatpush2.msra.mxu0 %v1154
    %1156 = vmatprep.subr.mxu0 0.0
    %v1157 = vand.u32 %v352, 4294901760
    %v1158 = vsub.f32 %v352, %v1157
    %v1159 = vand.u32 %v1158, 4294901760
    %1160 = vmatpush2.msra.mxu0 %v1159
    %1161 = vmatprep.subr.mxu0 0.0
    %v1162 = vand.u32 %v351, 4294901760
    %v1163 = vsub.f32 %v351, %v1162
    %v1164 = vand.u32 %v1163, 4294901760
    %1165 = vmatpush2.msra.mxu0 %v1164
    %1166 = vmatprep.subr.mxu0 0.0
    %v1167 = vand.u32 %v350, 4294901760
    %v1168 = vsub.f32 %v350, %v1167
    %v1169 = vand.u32 %v1168, 4294901760
    %1170 = vmatpush2.msra.mxu0 %v1169
    %1171 = vmatprep.subr.mxu0 0.0
    %v1172 = vand.u32 %v349, 4294901760
    %v1173 = vsub.f32 %v349, %v1172
    %v1174 = vand.u32 %v1173, 4294901760
    %1175 = vmatpush2.msra.mxu0 %v1174
    %1176 = vmatprep.subr.mxu0 0.0
    %v1177 = vand.u32 %v348, 4294901760
    %v1178 = vsub.f32 %v348, %v1177
    %v1179 = vand.u32 %v1178, 4294901760
    %1180 = vmatpush2.msra.mxu0 %v1179
    %1181 = vmatprep.subr.mxu0 0.0
    %v1182 = vand.u32 %v347, 4294901760
    %v1183 = vsub.f32 %v347, %v1182
    %v1184 = vand.u32 %v1183, 4294901760
    %1185 = vmatpush2.msra.mxu0 %v1184
    %v1186 = vand.u32 %v326, 4294901760
    %1187 = vmatprep.mubr.f32.mxu0 %v1186
    %v1188 = vand.u32 %v325, 4294901760
    %1189 = vmatmul.mubr.f32.gmra.mxu0 %v1188
    %v1190 = vpop.f32.mrf.mxu0
    %v1191 = vadd.f32 %v1012, %v1190
    %v1192 = vpop.f32.mrf.mxu0
    %v1193 = vand.u32 %v329, 4294901760
    %1194 = vmatprep.mubr.f32.mxu0 %v1193
    %v1195 = vand.u32 %v328, 4294901760
    %1196 = vmatmul.mubr.f32.gmra.mxu0 %v1195
    %v1197 = vpop.f32.mrf.mxu0
    %v1198 = vadd.f32 %v1023, %v1197
    %v1199 = vpop.f32.mrf.mxu0
    %1200 = vdwg.mxu0
    %1201 = vmatprep.subr.mxu0 0.0
    %v1202 = vand.u32 %v346, 4294901760
    %1203 = vmatpush1.msra.mxu0 %v1202
    %1204 = vmatprep.subr.mxu0 0.0
    %v1205 = vand.u32 %v345, 4294901760
    %1206 = vmatpush1.msra.mxu0 %v1205
    %1207 = vmatprep.subr.mxu0 0.0
    %v1208 = vand.u32 %v344, 4294901760
    %1209 = vmatpush1.msra.mxu0 %v1208
    %1210 = vmatprep.subr.mxu0 0.0
    %v1211 = vand.u32 %v343, 4294901760
    %1212 = vmatpush1.msra.mxu0 %v1211
    %1213 = vmatprep.subr.mxu0 0.0
    %v1214 = vand.u32 %v342, 4294901760
    %1215 = vmatpush1.msra.mxu0 %v1214
    %1216 = vmatprep.subr.mxu0 0.0
    %v1217 = vand.u32 %v341, 4294901760
    %1218 = vmatpush1.msra.mxu0 %v1217
    %1219 = vmatprep.subr.mxu0 0.0
    %v1220 = vand.u32 %v340, 4294901760
    %1221 = vmatpush1.msra.mxu0 %v1220
    %1222 = vmatprep.subr.mxu0 0.0
    %v1223 = vand.u32 %v339, 4294901760
    %1224 = vmatpush1.msra.mxu0 %v1223
    %1225 = vmatprep.subr.mxu0 0.0
    %v1226 = vand.u32 %v338, 4294901760
    %1227 = vmatpush1.msra.mxu0 %v1226
    %1228 = vmatprep.subr.mxu0 0.0
    %v1229 = vand.u32 %v337, 4294901760
    %1230 = vmatpush1.msra.mxu0 %v1229
    %1231 = vmatprep.subr.mxu0 0.0
    %v1232 = vand.u32 %v336, 4294901760
    %1233 = vmatpush1.msra.mxu0 %v1232
    %1234 = vmatprep.subr.mxu0 0.0
    %v1235 = vand.u32 %v335, 4294901760
    %1236 = vmatpush1.msra.mxu0 %v1235
    %1237 = vmatprep.subr.mxu0 0.0
    %v1238 = vand.u32 %v334, 4294901760
    %1239 = vmatpush1.msra.mxu0 %v1238
    %1240 = vmatprep.subr.mxu0 0.0
    %v1241 = vand.u32 %v333, 4294901760
    %1242 = vmatpush1.msra.mxu0 %v1241
    %1243 = vmatprep.subr.mxu0 0.0
    %v1244 = vand.u32 %v332, 4294901760
    %1245 = vmatpush1.msra.mxu0 %v1244
    %1246 = vmatprep.subr.mxu0 0.0
    %v1247 = vand.u32 %v331, 4294901760
    %1248 = vmatpush1.msra.mxu0 %v1247
    %1249 = vmatprep.subr.mxu0 0.0
    %v1250 = vand.u32 %v362, 4294901760
    %1251 = vmatpush2.msra.mxu0 %v1250
    %1252 = vmatprep.subr.mxu0 0.0
    %v1253 = vand.u32 %v361, 4294901760
    %1254 = vmatpush2.msra.mxu0 %v1253
    %1255 = vmatprep.subr.mxu0 0.0
    %v1256 = vand.u32 %v360, 4294901760
    %1257 = vmatpush2.msra.mxu0 %v1256
    %1258 = vmatprep.subr.mxu0 0.0
    %v1259 = vand.u32 %v359, 4294901760
    %1260 = vmatpush2.msra.mxu0 %v1259
    %1261 = vmatprep.subr.mxu0 0.0
    %v1262 = vand.u32 %v358, 4294901760
    %1263 = vmatpush2.msra.mxu0 %v1262
    %1264 = vmatprep.subr.mxu0 0.0
    %v1265 = vand.u32 %v357, 4294901760
    %1266 = vmatpush2.msra.mxu0 %v1265
    %1267 = vmatprep.subr.mxu0 0.0
    %v1268 = vand.u32 %v356, 4294901760
    %1269 = vmatpush2.msra.mxu0 %v1268
    %1270 = vmatprep.subr.mxu0 0.0
    %v1271 = vand.u32 %v355, 4294901760
    %1272 = vmatpush2.msra.mxu0 %v1271
    %1273 = vmatprep.subr.mxu0 0.0
    %v1274 = vand.u32 %v354, 4294901760
    %1275 = vmatpush2.msra.mxu0 %v1274
    %1276 = vmatprep.subr.mxu0 0.0
    %v1277 = vand.u32 %v353, 4294901760
    %1278 = vmatpush2.msra.mxu0 %v1277
    %1279 = vmatprep.subr.mxu0 0.0
    %v1280 = vand.u32 %v352, 4294901760
    %1281 = vmatpush2.msra.mxu0 %v1280
    %1282 = vmatprep.subr.mxu0 0.0
    %v1283 = vand.u32 %v351, 4294901760
    %1284 = vmatpush2.msra.mxu0 %v1283
    %1285 = vmatprep.subr.mxu0 0.0
    %v1286 = vand.u32 %v350, 4294901760
    %1287 = vmatpush2.msra.mxu0 %v1286
    %1288 = vmatprep.subr.mxu0 0.0
    %v1289 = vand.u32 %v349, 4294901760
    %1290 = vmatpush2.msra.mxu0 %v1289
    %1291 = vmatprep.subr.mxu0 0.0
    %v1292 = vand.u32 %v348, 4294901760
    %1293 = vmatpush2.msra.mxu0 %v1292
    %1294 = vmatprep.subr.mxu0 0.0
    %v1295 = vand.u32 %v347, 4294901760
    %1296 = vmatpush2.msra.mxu0 %v1295
    %v1297 = vand.u32 %v326, 4294901760
    %1298 = vmatprep.mubr.f32.mxu0 %v1297
    %v1299 = vand.u32 %v325, 4294901760
    %1300 = vmatmul.mubr.f32.gmra.mxu0 %v1299
    %v1301 = vpop.f32.mrf.mxu0
    %v1302 = vadd.f32 %v1191, %v1301
    %v1303 = vpop.f32.mrf.mxu0
    %v1304 = vand.u32 %v329, 4294901760
    %1305 = vmatprep.mubr.f32.mxu0 %v1304
    %v1306 = vand.u32 %v328, 4294901760
    %1307 = vmatmul.mubr.f32.gmra.mxu0 %v1306
    %v1308 = vpop.f32.mrf.mxu0
    %v1309 = vadd.f32 %v1198, %v1308
    %v1310 = vpop.f32.mrf.mxu0
    %1311 = vdwg.mxu0
    %1312 = vmatprep.subr.mxu0 0.0
    %1313 = vmatpush1.msra.mxu0 0.0
    %1314 = vmatprep.subr.mxu0 0.0
    %1315 = vmatpush1.msra.mxu0 0.0
    %1316 = vmatprep.subr.mxu0 0.0
    %1317 = vmatpush1.msra.mxu0 0.0
    %1318 = vmatprep.subr.mxu0 0.0
    %1319 = vmatpush1.msra.mxu0 0.0
    %1320 = vmatprep.subr.mxu0 0.0
    %v1321 = vand.u32 %v374, 4294901760
    %1322 = vmatpush1.msra.mxu0 %v1321
    %1323 = vmatprep.subr.mxu0 0.0
    %v1324 = vand.u32 %v373, 4294901760
    %1325 = vmatpush1.msra.mxu0 %v1324
    %1326 = vmatprep.subr.mxu0 0.0
    %v1327 = vand.u32 %v372, 4294901760
    %1328 = vmatpush1.msra.mxu0 %v1327
    %1329 = vmatprep.subr.mxu0 0.0
    %v1330 = vand.u32 %v371, 4294901760
    %1331 = vmatpush1.msra.mxu0 %v1330
    %1332 = vmatprep.subr.mxu0 0.0
    %v1333 = vand.u32 %v370, 4294901760
    %1334 = vmatpush1.msra.mxu0 %v1333
    %1335 = vmatprep.subr.mxu0 0.0
    %v1336 = vand.u32 %v369, 4294901760
    %1337 = vmatpush1.msra.mxu0 %v1336
    %1338 = vmatprep.subr.mxu0 0.0
    %v1339 = vand.u32 %v368, 4294901760
    %1340 = vmatpush1.msra.mxu0 %v1339
    %1341 = vmatprep.subr.mxu0 0.0
    %v1342 = vand.u32 %v367, 4294901760
    %1343 = vmatpush1.msra.mxu0 %v1342
    %1344 = vmatprep.subr.mxu0 0.0
    %v1345 = vand.u32 %v366, 4294901760
    %1346 = vmatpush1.msra.mxu0 %v1345
    %1347 = vmatprep.subr.mxu0 0.0
    %v1348 = vand.u32 %v365, 4294901760
    %1349 = vmatpush1.msra.mxu0 %v1348
    %1350 = vmatprep.subr.mxu0 0.0
    %v1351 = vand.u32 %v364, 4294901760
    %1352 = vmatpush1.msra.mxu0 %v1351
    %1353 = vmatprep.subr.mxu0 0.0
    %v1354 = vand.u32 %v363, 4294901760
    %1355 = vmatpush1.msra.mxu0 %v1354
    %1356 = vmatprep.subr.mxu0 0.0
    %1357 = vmatpush2.msra.mxu0 0.0
    %1358 = vmatprep.subr.mxu0 0.0
    %1359 = vmatpush2.msra.mxu0 0.0
    %1360 = vmatprep.subr.mxu0 0.0
    %1361 = vmatpush2.msra.mxu0 0.0
    %1362 = vmatprep.subr.mxu0 0.0
    %1363 = vmatpush2.msra.mxu0 0.0
    %1364 = vmatprep.subr.mxu0 0.0
    %1365 = vmatpush2.msra.mxu0 0.0
    %1366 = vmatprep.subr.mxu0 0.0
    %1367 = vmatpush2.msra.mxu0 0.0
    %1368 = vmatprep.subr.mxu0 0.0
    %1369 = vmatpush2.msra.mxu0 0.0
    %1370 = vmatprep.subr.mxu0 0.0
    %1371 = vmatpush2.msra.mxu0 0.0
    %1372 = vmatprep.subr.mxu0 0.0
    %1373 = vmatpush2.msra.mxu0 0.0
    %1374 = vmatprep.subr.mxu0 0.0
    %1375 = vmatpush2.msra.mxu0 0.0
    %1376 = vmatprep.subr.mxu0 0.0
    %1377 = vmatpush2.msra.mxu0 0.0
    %1378 = vmatprep.subr.mxu0 0.0
    %1379 = vmatpush2.msra.mxu0 0.0
    %1380 = vmatprep.subr.mxu0 0.0
    %1381 = vmatpush2.msra.mxu0 0.0
    %1382 = vmatprep.subr.mxu0 0.0
    %1383 = vmatpush2.msra.mxu0 0.0
    %1384 = vmatprep.subr.mxu0 0.0
    %1385 = vmatpush2.msra.mxu0 0.0
    %1386 = vmatprep.subr.mxu0 0.0
    %1387 = vmatpush2.msra.mxu0 0.0
    %1388 = vmatprep.mubr.f32.mxu0 0.0
    %v1389 = vand.u32 %v389, 4294901760
    %v1390 = vsub.f32 %v389, %v1389
    %v1391 = vand.u32 %v1390, 4294901760
    %v1392 = vsub.f32 %v1390, %v1391
    %v1393 = vand.u32 %v1392, 4294901760
    %1394 = vmatmul.mubr.f32.gmra.mxu0 %v1393
    %v1395 = vpop.f32.mrf.mxu0
    %v1396 = vadd.f32 %v1302, %v1395
    %v1397 = vpop.f32.mrf.mxu0
    %1398 = vmatprep.mubr.f32.mxu0 0.0
    %v1399 = vand.u32 %v392, 4294901760
    %v1400 = vsub.f32 %v392, %v1399
    %v1401 = vand.u32 %v1400, 4294901760
    %v1402 = vsub.f32 %v1400, %v1401
    %v1403 = vand.u32 %v1402, 4294901760
    %1404 = vmatmul.mubr.f32.gmra.mxu0 %v1403
    %v1405 = vpop.f32.mrf.mxu0
    %v1406 = vadd.f32 %v1309, %v1405
    %v1407 = vpop.f32.mrf.mxu0
    %1408 = vdwg.mxu0
    %1409 = vmatprep.subr.mxu0 0.0
    %1410 = vmatpush1.msra.mxu0 0.0
    %1411 = vmatprep.subr.mxu0 0.0
    %1412 = vmatpush1.msra.mxu0 0.0
    %1413 = vmatprep.subr.mxu0 0.0
    %1414 = vmatpush1.msra.mxu0 0.0
    %1415 = vmatprep.subr.mxu0 0.0
    %1416 = vmatpush1.msra.mxu0 0.0
    %1417 = vmatprep.subr.mxu0 0.0
    %v1418 = vand.u32 %v374, 4294901760
    %v1419 = vsub.f32 %v374, %v1418
    %v1420 = vand.u32 %v1419, 4294901760
    %v1421 = vsub.f32 %v1419, %v1420
    %v1422 = vand.u32 %v1421, 4294901760
    %1423 = vmatpush1.msra.mxu0 %v1422
    %1424 = vmatprep.subr.mxu0 0.0
    %v1425 = vand.u32 %v373, 4294901760
    %v1426 = vsub.f32 %v373, %v1425
    %v1427 = vand.u32 %v1426, 4294901760
    %v1428 = vsub.f32 %v1426, %v1427
    %v1429 = vand.u32 %v1428, 4294901760
    %1430 = vmatpush1.msra.mxu0 %v1429
    %1431 = vmatprep.subr.mxu0 0.0
    %v1432 = vand.u32 %v372, 4294901760
    %v1433 = vsub.f32 %v372, %v1432
    %v1434 = vand.u32 %v1433, 4294901760
    %v1435 = vsub.f32 %v1433, %v1434
    %v1436 = vand.u32 %v1435, 4294901760
    %1437 = vmatpush1.msra.mxu0 %v1436
    %1438 = vmatprep.subr.mxu0 0.0
    %v1439 = vand.u32 %v371, 4294901760
    %v1440 = vsub.f32 %v371, %v1439
    %v1441 = vand.u32 %v1440, 4294901760
    %v1442 = vsub.f32 %v1440, %v1441
    %v1443 = vand.u32 %v1442, 4294901760
    %1444 = vmatpush1.msra.mxu0 %v1443
    %1445 = vmatprep.subr.mxu0 0.0
    %v1446 = vand.u32 %v370, 4294901760
    %v1447 = vsub.f32 %v370, %v1446
    %v1448 = vand.u32 %v1447, 4294901760
    %v1449 = vsub.f32 %v1447, %v1448
    %v1450 = vand.u32 %v1449, 4294901760
    %1451 = vmatpush1.msra.mxu0 %v1450
    %1452 = vmatprep.subr.mxu0 0.0
    %v1453 = vand.u32 %v369, 4294901760
    %v1454 = vsub.f32 %v369, %v1453
    %v1455 = vand.u32 %v1454, 4294901760
    %v1456 = vsub.f32 %v1454, %v1455
    %v1457 = vand.u32 %v1456, 4294901760
    %1458 = vmatpush1.msra.mxu0 %v1457
    %1459 = vmatprep.subr.mxu0 0.0
    %v1460 = vand.u32 %v368, 4294901760
    %v1461 = vsub.f32 %v368, %v1460
    %v1462 = vand.u32 %v1461, 4294901760
    %v1463 = vsub.f32 %v1461, %v1462
    %v1464 = vand.u32 %v1463, 4294901760
    %1465 = vmatpush1.msra.mxu0 %v1464
    %1466 = vmatprep.subr.mxu0 0.0
    %v1467 = vand.u32 %v367, 4294901760
    %v1468 = vsub.f32 %v367, %v1467
    %v1469 = vand.u32 %v1468, 4294901760
    %v1470 = vsub.f32 %v1468, %v1469
    %v1471 = vand.u32 %v1470, 4294901760
    %1472 = vmatpush1.msra.mxu0 %v1471
    %1473 = vmatprep.subr.mxu0 0.0
    %v1474 = vand.u32 %v366, 4294901760
    %v1475 = vsub.f32 %v366, %v1474
    %v1476 = vand.u32 %v1475, 4294901760
    %v1477 = vsub.f32 %v1475, %v1476
    %v1478 = vand.u32 %v1477, 4294901760
    %1479 = vmatpush1.msra.mxu0 %v1478
    %1480 = vmatprep.subr.mxu0 0.0
    %v1481 = vand.u32 %v365, 4294901760
    %v1482 = vsub.f32 %v365, %v1481
    %v1483 = vand.u32 %v1482, 4294901760
    %v1484 = vsub.f32 %v1482, %v1483
    %v1485 = vand.u32 %v1484, 4294901760
    %1486 = vmatpush1.msra.mxu0 %v1485
    %1487 = vmatprep.subr.mxu0 0.0
    %v1488 = vand.u32 %v364, 4294901760
    %v1489 = vsub.f32 %v364, %v1488
    %v1490 = vand.u32 %v1489, 4294901760
    %v1491 = vsub.f32 %v1489, %v1490
    %v1492 = vand.u32 %v1491, 4294901760
    %1493 = vmatpush1.msra.mxu0 %v1492
    %1494 = vmatprep.subr.mxu0 0.0
    %v1495 = vand.u32 %v363, 4294901760
    %v1496 = vsub.f32 %v363, %v1495
    %v1497 = vand.u32 %v1496, 4294901760
    %v1498 = vsub.f32 %v1496, %v1497
    %v1499 = vand.u32 %v1498, 4294901760
    %1500 = vmatpush1.msra.mxu0 %v1499
    %1501 = vmatprep.subr.mxu0 0.0
    %1502 = vmatpush2.msra.mxu0 0.0
    %1503 = vmatprep.subr.mxu0 0.0
    %1504 = vmatpush2.msra.mxu0 0.0
    %1505 = vmatprep.subr.mxu0 0.0
    %1506 = vmatpush2.msra.mxu0 0.0
    %1507 = vmatprep.subr.mxu0 0.0
    %1508 = vmatpush2.msra.mxu0 0.0
    %1509 = vmatprep.subr.mxu0 0.0
    %1510 = vmatpush2.msra.mxu0 0.0
    %1511 = vmatprep.subr.mxu0 0.0
    %1512 = vmatpush2.msra.mxu0 0.0
    %1513 = vmatprep.subr.mxu0 0.0
    %1514 = vmatpush2.msra.mxu0 0.0
    %1515 = vmatprep.subr.mxu0 0.0
    %1516 = vmatpush2.msra.mxu0 0.0
    %1517 = vmatprep.subr.mxu0 0.0
    %1518 = vmatpush2.msra.mxu0 0.0
    %1519 = vmatprep.subr.mxu0 0.0
    %1520 = vmatpush2.msra.mxu0 0.0
    %1521 = vmatprep.subr.mxu0 0.0
    %1522 = vmatpush2.msra.mxu0 0.0
    %1523 = vmatprep.subr.mxu0 0.0
    %1524 = vmatpush2.msra.mxu0 0.0
    %1525 = vmatprep.subr.mxu0 0.0
    %1526 = vmatpush2.msra.mxu0 0.0
    %1527 = vmatprep.subr.mxu0 0.0
    %1528 = vmatpush2.msra.mxu0 0.0
    %1529 = vmatprep.subr.mxu0 0.0
    %1530 = vmatpush2.msra.mxu0 0.0
    %1531 = vmatprep.subr.mxu0 0.0
    %1532 = vmatpush2.msra.mxu0 0.0
    %1533 = vmatprep.mubr.f32.mxu0 0.0
    %v1534 = vand.u32 %v389, 4294901760
    %1535 = vmatmul.mubr.f32.gmra.mxu0 %v1534
    %v1536 = vpop.f32.mrf.mxu0
    %v1537 = vadd.f32 %v1396, %v1536
    %v1538 = vpop.f32.mrf.mxu0
    %1539 = vmatprep.mubr.f32.mxu0 0.0
    %v1540 = vand.u32 %v392, 4294901760
    %1541 = vmatmul.mubr.f32.gmra.mxu0 %v1540
    %v1542 = vpop.f32.mrf.mxu0
    %v1543 = vadd.f32 %v1406, %v1542
    %v1544 = vpop.f32.mrf.mxu0
    %1545 = vdwg.mxu0
    %1546 = vmatprep.subr.mxu0 0.0
    %1547 = vmatpush1.msra.mxu0 0.0
    %1548 = vmatprep.subr.mxu0 0.0
    %1549 = vmatpush1.msra.mxu0 0.0
    %1550 = vmatprep.subr.mxu0 0.0
    %1551 = vmatpush1.msra.mxu0 0.0
    %1552 = vmatprep.subr.mxu0 0.0
    %1553 = vmatpush1.msra.mxu0 0.0
    %1554 = vmatprep.subr.mxu0 0.0
    %v1555 = vand.u32 %v374, 4294901760
    %v1556 = vsub.f32 %v374, %v1555
    %1557 = vmatpush1.msra.mxu0 %v1556
    %1558 = vmatprep.subr.mxu0 0.0
    %v1559 = vand.u32 %v373, 4294901760
    %v1560 = vsub.f32 %v373, %v1559
    %1561 = vmatpush1.msra.mxu0 %v1560
    %1562 = vmatprep.subr.mxu0 0.0
    %v1563 = vand.u32 %v372, 4294901760
    %v1564 = vsub.f32 %v372, %v1563
    %1565 = vmatpush1.msra.mxu0 %v1564
    %1566 = vmatprep.subr.mxu0 0.0
    %v1567 = vand.u32 %v371, 4294901760
    %v1568 = vsub.f32 %v371, %v1567
    %1569 = vmatpush1.msra.mxu0 %v1568
    %1570 = vmatprep.subr.mxu0 0.0
    %v1571 = vand.u32 %v370, 4294901760
    %v1572 = vsub.f32 %v370, %v1571
    %1573 = vmatpush1.msra.mxu0 %v1572
    %1574 = vmatprep.subr.mxu0 0.0
    %v1575 = vand.u32 %v369, 4294901760
    %v1576 = vsub.f32 %v369, %v1575
    %1577 = vmatpush1.msra.mxu0 %v1576
    %1578 = vmatprep.subr.mxu0 0.0
    %v1579 = vand.u32 %v368, 4294901760
    %v1580 = vsub.f32 %v368, %v1579
    %1581 = vmatpush1.msra.mxu0 %v1580
    %1582 = vmatprep.subr.mxu0 0.0
    %v1583 = vand.u32 %v367, 4294901760
    %v1584 = vsub.f32 %v367, %v1583
    %1585 = vmatpush1.msra.mxu0 %v1584
    %1586 = vmatprep.subr.mxu0 0.0
    %v1587 = vand.u32 %v366, 4294901760
    %v1588 = vsub.f32 %v366, %v1587
    %1589 = vmatpush1.msra.mxu0 %v1588
    %1590 = vmatprep.subr.mxu0 0.0
    %v1591 = vand.u32 %v365, 4294901760
    %v1592 = vsub.f32 %v365, %v1591
    %1593 = vmatpush1.msra.mxu0 %v1592
    %1594 = vmatprep.subr.mxu0 0.0
    %v1595 = vand.u32 %v364, 4294901760
    %v1596 = vsub.f32 %v364, %v1595
    %1597 = vmatpush1.msra.mxu0 %v1596
    %1598 = vmatprep.subr.mxu0 0.0
    %v1599 = vand.u32 %v363, 4294901760
    %v1600 = vsub.f32 %v363, %v1599
    %1601 = vmatpush1.msra.mxu0 %v1600
    %1602 = vmatprep.subr.mxu0 0.0
    %1603 = vmatpush2.msra.mxu0 0.0
    %1604 = vmatprep.subr.mxu0 0.0
    %1605 = vmatpush2.msra.mxu0 0.0
    %1606 = vmatprep.subr.mxu0 0.0
    %1607 = vmatpush2.msra.mxu0 0.0
    %1608 = vmatprep.subr.mxu0 0.0
    %1609 = vmatpush2.msra.mxu0 0.0
    %1610 = vmatprep.subr.mxu0 0.0
    %1611 = vmatpush2.msra.mxu0 0.0
    %1612 = vmatprep.subr.mxu0 0.0
    %1613 = vmatpush2.msra.mxu0 0.0
    %1614 = vmatprep.subr.mxu0 0.0
    %1615 = vmatpush2.msra.mxu0 0.0
    %1616 = vmatprep.subr.mxu0 0.0
    %1617 = vmatpush2.msra.mxu0 0.0
    %1618 = vmatprep.subr.mxu0 0.0
    %1619 = vmatpush2.msra.mxu0 0.0
    %1620 = vmatprep.subr.mxu0 0.0
    %1621 = vmatpush2.msra.mxu0 0.0
    %1622 = vmatprep.subr.mxu0 0.0
    %1623 = vmatpush2.msra.mxu0 0.0
    %1624 = vmatprep.subr.mxu0 0.0
    %1625 = vmatpush2.msra.mxu0 0.0
    %1626 = vmatprep.subr.mxu0 0.0
    %1627 = vmatpush2.msra.mxu0 0.0
    %1628 = vmatprep.subr.mxu0 0.0
    %1629 = vmatpush2.msra.mxu0 0.0
    %1630 = vmatprep.subr.mxu0 0.0
    %1631 = vmatpush2.msra.mxu0 0.0
    %1632 = vmatprep.subr.mxu0 0.0
    %1633 = vmatpush2.msra.mxu0 0.0
    %1634 = vmatprep.mubr.f32.mxu0 0.0
    %v1635 = vand.u32 %v389, 4294901760
    %v1636 = vsub.f32 %v389, %v1635
    %1637 = vmatmul.mubr.f32.gmra.mxu0 %v1636
    %v1638 = vpop.f32.mrf.mxu0
    %v1639 = vadd.f32 %v1537, %v1638
    %v1640 = vpop.f32.mrf.mxu0
    %1641 = vmatprep.mubr.f32.mxu0 0.0
    %v1642 = vand.u32 %v392, 4294901760
    %v1643 = vsub.f32 %v392, %v1642
    %1644 = vmatmul.mubr.f32.gmra.mxu0 %v1643
    %v1645 = vpop.f32.mrf.mxu0
    %v1646 = vadd.f32 %v1543, %v1645
    %v1647 = vpop.f32.mrf.mxu0
    %1648 = vdwg.mxu0
    %1649 = vmatprep.subr.mxu0 0.0
    %1650 = vmatpush1.msra.mxu0 0.0
    %1651 = vmatprep.subr.mxu0 0.0
    %1652 = vmatpush1.msra.mxu0 0.0
    %1653 = vmatprep.subr.mxu0 0.0
    %1654 = vmatpush1.msra.mxu0 0.0
    %1655 = vmatprep.subr.mxu0 0.0
    %1656 = vmatpush1.msra.mxu0 0.0
    %1657 = vmatprep.subr.mxu0 0.0
    %v1658 = vand.u32 %v374, 4294901760
    %1659 = vmatpush1.msra.mxu0 %v1658
    %1660 = vmatprep.subr.mxu0 0.0
    %v1661 = vand.u32 %v373, 4294901760
    %1662 = vmatpush1.msra.mxu0 %v1661
    %1663 = vmatprep.subr.mxu0 0.0
    %v1664 = vand.u32 %v372, 4294901760
    %1665 = vmatpush1.msra.mxu0 %v1664
    %1666 = vmatprep.subr.mxu0 0.0
    %v1667 = vand.u32 %v371, 4294901760
    %1668 = vmatpush1.msra.mxu0 %v1667
    %1669 = vmatprep.subr.mxu0 0.0
    %v1670 = vand.u32 %v370, 4294901760
    %1671 = vmatpush1.msra.mxu0 %v1670
    %1672 = vmatprep.subr.mxu0 0.0
    %v1673 = vand.u32 %v369, 4294901760
    %1674 = vmatpush1.msra.mxu0 %v1673
    %1675 = vmatprep.subr.mxu0 0.0
    %v1676 = vand.u32 %v368, 4294901760
    %1677 = vmatpush1.msra.mxu0 %v1676
    %1678 = vmatprep.subr.mxu0 0.0
    %v1679 = vand.u32 %v367, 4294901760
    %1680 = vmatpush1.msra.mxu0 %v1679
    %1681 = vmatprep.subr.mxu0 0.0
    %v1682 = vand.u32 %v366, 4294901760
    %1683 = vmatpush1.msra.mxu0 %v1682
    %1684 = vmatprep.subr.mxu0 0.0
    %v1685 = vand.u32 %v365, 4294901760
    %1686 = vmatpush1.msra.mxu0 %v1685
    %1687 = vmatprep.subr.mxu0 0.0
    %v1688 = vand.u32 %v364, 4294901760
    %1689 = vmatpush1.msra.mxu0 %v1688
    %1690 = vmatprep.subr.mxu0 0.0
    %v1691 = vand.u32 %v363, 4294901760
    %1692 = vmatpush1.msra.mxu0 %v1691
    %1693 = vmatprep.subr.mxu0 0.0
    %1694 = vmatpush2.msra.mxu0 0.0
    %1695 = vmatprep.subr.mxu0 0.0
    %1696 = vmatpush2.msra.mxu0 0.0
    %1697 = vmatprep.subr.mxu0 0.0
    %1698 = vmatpush2.msra.mxu0 0.0
    %1699 = vmatprep.subr.mxu0 0.0
    %1700 = vmatpush2.msra.mxu0 0.0
    %1701 = vmatprep.subr.mxu0 0.0
    %1702 = vmatpush2.msra.mxu0 0.0
    %1703 = vmatprep.subr.mxu0 0.0
    %1704 = vmatpush2.msra.mxu0 0.0
    %1705 = vmatprep.subr.mxu0 0.0
    %1706 = vmatpush2.msra.mxu0 0.0
    %1707 = vmatprep.subr.mxu0 0.0
    %1708 = vmatpush2.msra.mxu0 0.0
    %1709 = vmatprep.subr.mxu0 0.0
    %1710 = vmatpush2.msra.mxu0 0.0
    %1711 = vmatprep.subr.mxu0 0.0
    %1712 = vmatpush2.msra.mxu0 0.0
    %1713 = vmatprep.subr.mxu0 0.0
    %1714 = vmatpush2.msra.mxu0 0.0
    %1715 = vmatprep.subr.mxu0 0.0
    %1716 = vmatpush2.msra.mxu0 0.0
    %1717 = vmatprep.subr.mxu0 0.0
    %1718 = vmatpush2.msra.mxu0 0.0
    %1719 = vmatprep.subr.mxu0 0.0
    %1720 = vmatpush2.msra.mxu0 0.0
    %1721 = vmatprep.subr.mxu0 0.0
    %1722 = vmatpush2.msra.mxu0 0.0
    %1723 = vmatprep.subr.mxu0 0.0
    %1724 = vmatpush2.msra.mxu0 0.0
    %1725 = vmatprep.mubr.f32.mxu0 0.0
    %v1726 = vand.u32 %v389, 4294901760
    %v1727 = vsub.f32 %v389, %v1726
    %v1728 = vand.u32 %v1727, 4294901760
    %1729 = vmatmul.mubr.f32.gmra.mxu0 %v1728
    %v1730 = vpop.f32.mrf.mxu0
    %v1731 = vadd.f32 %v1639, %v1730
    %v1732 = vpop.f32.mrf.mxu0
    %1733 = vmatprep.mubr.f32.mxu0 0.0
    %v1734 = vand.u32 %v392, 4294901760
    %v1735 = vsub.f32 %v392, %v1734
    %v1736 = vand.u32 %v1735, 4294901760
    %1737 = vmatmul.mubr.f32.gmra.mxu0 %v1736
    %v1738 = vpop.f32.mrf.mxu0
    %v1739 = vadd.f32 %v1646, %v1738
    %v1740 = vpop.f32.mrf.mxu0
    %1741 = vdwg.mxu0
    %1742 = vmatprep.subr.mxu0 0.0
    %1743 = vmatpush1.msra.mxu0 0.0
    %1744 = vmatprep.subr.mxu0 0.0
    %1745 = vmatpush1.msra.mxu0 0.0
    %1746 = vmatprep.subr.mxu0 0.0
    %1747 = vmatpush1.msra.mxu0 0.0
    %1748 = vmatprep.subr.mxu0 0.0
    %1749 = vmatpush1.msra.mxu0 0.0
    %1750 = vmatprep.subr.mxu0 0.0
    %v1751 = vand.u32 %v374, 4294901760
    %v1752 = vsub.f32 %v374, %v1751
    %v1753 = vand.u32 %v1752, 4294901760
    %1754 = vmatpush1.msra.mxu0 %v1753
    %1755 = vmatprep.subr.mxu0 0.0
    %v1756 = vand.u32 %v373, 4294901760
    %v1757 = vsub.f32 %v373, %v1756
    %v1758 = vand.u32 %v1757, 4294901760
    %1759 = vmatpush1.msra.mxu0 %v1758
    %1760 = vmatprep.subr.mxu0 0.0
    %v1761 = vand.u32 %v372, 4294901760
    %v1762 = vsub.f32 %v372, %v1761
    %v1763 = vand.u32 %v1762, 4294901760
    %1764 = vmatpush1.msra.mxu0 %v1763
    %1765 = vmatprep.subr.mxu0 0.0
    %v1766 = vand.u32 %v371, 4294901760
    %v1767 = vsub.f32 %v371, %v1766
    %v1768 = vand.u32 %v1767, 4294901760
    %1769 = vmatpush1.msra.mxu0 %v1768
    %1770 = vmatprep.subr.mxu0 0.0
    %v1771 = vand.u32 %v370, 4294901760
    %v1772 = vsub.f32 %v370, %v1771
    %v1773 = vand.u32 %v1772, 4294901760
    %1774 = vmatpush1.msra.mxu0 %v1773
    %1775 = vmatprep.subr.mxu0 0.0
    %v1776 = vand.u32 %v369, 4294901760
    %v1777 = vsub.f32 %v369, %v1776
    %v1778 = vand.u32 %v1777, 4294901760
    %1779 = vmatpush1.msra.mxu0 %v1778
    %1780 = vmatprep.subr.mxu0 0.0
    %v1781 = vand.u32 %v368, 4294901760
    %v1782 = vsub.f32 %v368, %v1781
    %v1783 = vand.u32 %v1782, 4294901760
    %1784 = vmatpush1.msra.mxu0 %v1783
    %1785 = vmatprep.subr.mxu0 0.0
    %v1786 = vand.u32 %v367, 4294901760
    %v1787 = vsub.f32 %v367, %v1786
    %v1788 = vand.u32 %v1787, 4294901760
    %1789 = vmatpush1.msra.mxu0 %v1788
    %1790 = vmatprep.subr.mxu0 0.0
    %v1791 = vand.u32 %v366, 4294901760
    %v1792 = vsub.f32 %v366, %v1791
    %v1793 = vand.u32 %v1792, 4294901760
    %1794 = vmatpush1.msra.mxu0 %v1793
    %1795 = vmatprep.subr.mxu0 0.0
    %v1796 = vand.u32 %v365, 4294901760
    %v1797 = vsub.f32 %v365, %v1796
    %v1798 = vand.u32 %v1797, 4294901760
    %1799 = vmatpush1.msra.mxu0 %v1798
    %1800 = vmatprep.subr.mxu0 0.0
    %v1801 = vand.u32 %v364, 4294901760
    %v1802 = vsub.f32 %v364, %v1801
    %v1803 = vand.u32 %v1802, 4294901760
    %1804 = vmatpush1.msra.mxu0 %v1803
    %1805 = vmatprep.subr.mxu0 0.0
    %v1806 = vand.u32 %v363, 4294901760
    %v1807 = vsub.f32 %v363, %v1806
    %v1808 = vand.u32 %v1807, 4294901760
    %1809 = vmatpush1.msra.mxu0 %v1808
    %1810 = vmatprep.subr.mxu0 0.0
    %1811 = vmatpush2.msra.mxu0 0.0
    %1812 = vmatprep.subr.mxu0 0.0
    %1813 = vmatpush2.msra.mxu0 0.0
    %1814 = vmatprep.subr.mxu0 0.0
    %1815 = vmatpush2.msra.mxu0 0.0
    %1816 = vmatprep.subr.mxu0 0.0
    %1817 = vmatpush2.msra.mxu0 0.0
    %1818 = vmatprep.subr.mxu0 0.0
    %1819 = vmatpush2.msra.mxu0 0.0
    %1820 = vmatprep.subr.mxu0 0.0
    %1821 = vmatpush2.msra.mxu0 0.0
    %1822 = vmatprep.subr.mxu0 0.0
    %1823 = vmatpush2.msra.mxu0 0.0
    %1824 = vmatprep.subr.mxu0 0.0
    %1825 = vmatpush2.msra.mxu0 0.0
    %1826 = vmatprep.subr.mxu0 0.0
    %1827 = vmatpush2.msra.mxu0 0.0
    %1828 = vmatprep.subr.mxu0 0.0
    %1829 = vmatpush2.msra.mxu0 0.0
    %1830 = vmatprep.subr.mxu0 0.0
    %1831 = vmatpush2.msra.mxu0 0.0
    %1832 = vmatprep.subr.mxu0 0.0
    %1833 = vmatpush2.msra.mxu0 0.0
    %1834 = vmatprep.subr.mxu0 0.0
    %1835 = vmatpush2.msra.mxu0 0.0
    %1836 = vmatprep.subr.mxu0 0.0
    %1837 = vmatpush2.msra.mxu0 0.0
    %1838 = vmatprep.subr.mxu0 0.0
    %1839 = vmatpush2.msra.mxu0 0.0
    %1840 = vmatprep.subr.mxu0 0.0
    %1841 = vmatpush2.msra.mxu0 0.0
    %1842 = vmatprep.mubr.f32.mxu0 0.0
    %v1843 = vand.u32 %v389, 4294901760
    %1844 = vmatmul.mubr.f32.gmra.mxu0 %v1843
    %v1845 = vpop.f32.mrf.mxu0
    %v1846 = vadd.f32 %v1731, %v1845
    %v1847 = vpop.f32.mrf.mxu0
    %1848 = vmatprep.mubr.f32.mxu0 0.0
    %v1849 = vand.u32 %v392, 4294901760
    %1850 = vmatmul.mubr.f32.gmra.mxu0 %v1849
    %v1851 = vpop.f32.mrf.mxu0
    %v1852 = vadd.f32 %v1739, %v1851
    %v1853 = vpop.f32.mrf.mxu0
    %1854 = vdwg.mxu0
    %1855 = vmatprep.subr.mxu0 0.0
    %1856 = vmatpush1.msra.mxu0 0.0
    %1857 = vmatprep.subr.mxu0 0.0
    %1858 = vmatpush1.msra.mxu0 0.0
    %1859 = vmatprep.subr.mxu0 0.0
    %1860 = vmatpush1.msra.mxu0 0.0
    %1861 = vmatprep.subr.mxu0 0.0
    %1862 = vmatpush1.msra.mxu0 0.0
    %1863 = vmatprep.subr.mxu0 0.0
    %v1864 = vand.u32 %v374, 4294901760
    %1865 = vmatpush1.msra.mxu0 %v1864
    %1866 = vmatprep.subr.mxu0 0.0
    %v1867 = vand.u32 %v373, 4294901760
    %1868 = vmatpush1.msra.mxu0 %v1867
    %1869 = vmatprep.subr.mxu0 0.0
    %v1870 = vand.u32 %v372, 4294901760
    %1871 = vmatpush1.msra.mxu0 %v1870
    %1872 = vmatprep.subr.mxu0 0.0
    %v1873 = vand.u32 %v371, 4294901760
    %1874 = vmatpush1.msra.mxu0 %v1873
    %1875 = vmatprep.subr.mxu0 0.0
    %v1876 = vand.u32 %v370, 4294901760
    %1877 = vmatpush1.msra.mxu0 %v1876
    %1878 = vmatprep.subr.mxu0 0.0
    %v1879 = vand.u32 %v369, 4294901760
    %1880 = vmatpush1.msra.mxu0 %v1879
    %1881 = vmatprep.subr.mxu0 0.0
    %v1882 = vand.u32 %v368, 4294901760
    %1883 = vmatpush1.msra.mxu0 %v1882
    %1884 = vmatprep.subr.mxu0 0.0
    %v1885 = vand.u32 %v367, 4294901760
    %1886 = vmatpush1.msra.mxu0 %v1885
    %1887 = vmatprep.subr.mxu0 0.0
    %v1888 = vand.u32 %v366, 4294901760
    %1889 = vmatpush1.msra.mxu0 %v1888
    %1890 = vmatprep.subr.mxu0 0.0
    %v1891 = vand.u32 %v365, 4294901760
    %1892 = vmatpush1.msra.mxu0 %v1891
    %1893 = vmatprep.subr.mxu0 0.0
    %v1894 = vand.u32 %v364, 4294901760
    %1895 = vmatpush1.msra.mxu0 %v1894
    %1896 = vmatprep.subr.mxu0 0.0
    %v1897 = vand.u32 %v363, 4294901760
    %1898 = vmatpush1.msra.mxu0 %v1897
    %1899 = vmatprep.subr.mxu0 0.0
    %1900 = vmatpush2.msra.mxu0 0.0
    %1901 = vmatprep.subr.mxu0 0.0
    %1902 = vmatpush2.msra.mxu0 0.0
    %1903 = vmatprep.subr.mxu0 0.0
    %1904 = vmatpush2.msra.mxu0 0.0
    %1905 = vmatprep.subr.mxu0 0.0
    %1906 = vmatpush2.msra.mxu0 0.0
    %1907 = vmatprep.subr.mxu0 0.0
    %1908 = vmatpush2.msra.mxu0 0.0
    %1909 = vmatprep.subr.mxu0 0.0
    %1910 = vmatpush2.msra.mxu0 0.0
    %1911 = vmatprep.subr.mxu0 0.0
    %1912 = vmatpush2.msra.mxu0 0.0
    %1913 = vmatprep.subr.mxu0 0.0
    %1914 = vmatpush2.msra.mxu0 0.0
    %1915 = vmatprep.subr.mxu0 0.0
    %1916 = vmatpush2.msra.mxu0 0.0
    %1917 = vmatprep.subr.mxu0 0.0
    %1918 = vmatpush2.msra.mxu0 0.0
    %1919 = vmatprep.subr.mxu0 0.0
    %1920 = vmatpush2.msra.mxu0 0.0
    %1921 = vmatprep.subr.mxu0 0.0
    %1922 = vmatpush2.msra.mxu0 0.0
    %1923 = vmatprep.subr.mxu0 0.0
    %1924 = vmatpush2.msra.mxu0 0.0
    %1925 = vmatprep.subr.mxu0 0.0
    %1926 = vmatpush2.msra.mxu0 0.0
    %1927 = vmatprep.subr.mxu0 0.0
    %1928 = vmatpush2.msra.mxu0 0.0
    %1929 = vmatprep.subr.mxu0 0.0
    %1930 = vmatpush2.msra.mxu0 0.0
    %1931 = vmatprep.mubr.f32.mxu0 0.0
    %v1932 = vand.u32 %v389, 4294901760
    %1933 = vmatmul.mubr.f32.gmra.mxu0 %v1932
    %v1934 = vpop.f32.mrf.mxu0
    %v1935 = vadd.f32 %v1846, %v1934
    %v1936 = vpop.f32.mrf.mxu0
    %1937 = vmatprep.mubr.f32.mxu0 0.0
    %v1938 = vand.u32 %v392, 4294901760
    %1939 = vmatmul.mubr.f32.gmra.mxu0 %v1938
    %v1940 = vpop.f32.mrf.mxu0
    %v1941 = vadd.f32 %v1852, %v1940
    %v1942 = vpop.f32.mrf.mxu0
    %1943 = vdwg.mxu0
    %1944 = vst.msk [vmem:[#allocation8] sm:$0xff] %vm109, %v1935
    %vm1945 = vcmask 257024
    %1946 = vst.msk [vmem:[#allocation8 + $0x8] sm:$0xf] %vm1945, %v1941
    // Predicated region
    $region22: #{tpu_custom_call.1} parent=1 // pred_check
      _
    $region23: #{tpu_custom_call.1} parent=1 // pred_check_branch
      %1948 = sbr.rel (0) target = $region25
    $region24: #{tpu_custom_call.1} parent=1 // pred_region
      %s1950 = ssub.s32 256, 256
      %1951 = vsyncadd [#allocation5], %s1950
      %s1952 = sshll.u32 [#allocation8], 4
      %s1953 = int_to_ptr.vmem [resolvable:$true] %s1952
      %1958 = dma.vmem_to_hbm [thread:$0]  %s1953, 256, %s3, [#allocation5], 128, 128, 8
    $region25: #{tpu_custom_call.1} parent=1 // pred_fallthru
      _
    // Predicated region
    $region26: #{tpu_custom_call.1} parent=1 // pred_check
      _
    $region27: #{tpu_custom_call.1} parent=1 // pred_check_branch
      %1960 = sbr.rel (0) target = $region29
    $region28: #{tpu_custom_call.1} parent=1 // pred_region
      %1961 = dma.done [#allocation5], 256
    $region29: #{tpu_custom_call.1} parent=1 // pred_fallthru
      _
    %1962 = vsyncpa [#allocation4], 1
    %1963 = vsyncpa [#allocation7], 1
    %1964 = vsyncpa [#allocation5], 1

</llo_original>
